<compile_context>
chip_gen: v6e
topology: v6e:2x2x1
jax: 0.10.0
libtpu: 0.0.40
codegen_flags: <defaults>
</compile_context>

<pallas_src>
import jax
import jax.numpy as jnp
from jax import lax
from jax.experimental import pallas as pl
from jax.experimental.pallas import tpu as pltpu


def _conv_inter_kernel(xt_ref, w3_ref, w1_ref, shift_ref, b1_ref, out_ref):
    # xt_ref:    (tH+2, W+2, Cp) bf16 halo-carrying input tile
    # w3_ref:    (9*Cp, Cp)      bf16 3x3 weights (BN scale pre-folded), stacked-K layout
    # w1_ref:    (Cp, Cp)        bf16 1x1 weights
    # shift_ref: (1, Cp)         f32  BN shift (beta - mean*scale)
    # b1_ref:    (1, Cp)         f32  1x1 bias
    # out_ref:   (tH, W, Cp)     f32
    Hh, Wp, Cp = xt_ref.shape
    tH, W = Hh - 2, Wp - 2

    x = xt_ref[...]  # bf16

    # im2col: stack the 9 shifted taps along the channel (lane) axis so the 3x3
    # conv becomes a single stacked-K MXU matmul (K = 9*Cp).
    taps = [x[dy:dy + tH, dx:dx + W, :] for dy in range(3) for dx in range(3)]
    patches = jnp.concatenate(taps, axis=-1).reshape(tH * W, 9 * Cp)

    # 3x3 conv (BN scale folded into w3), f32 accumulation on the MXU.
    acc = jnp.dot(patches, w3_ref[...], preferred_element_type=jnp.float32)
    # BN shift + ReLU.
    acc = jnp.maximum(acc + shift_ref[...], 0.0)
    # 1x1 conv == channel matmul, plus bias.
    y = jnp.dot(acc.astype(w1_ref.dtype), w1_ref[...],
                preferred_element_type=jnp.float32) + b1_ref[...]

    out_ref[...] = y.reshape(tH, W, Cp).astype(out_ref.dtype)


def prepare_params(w3_torch, w1_torch, gamma, beta, run_mean, run_var, b1, eps=1e-5):
    """Fold BN(eval) scale into the 3x3 weights, pad channels to a multiple of 128
    (lane-dense), lay out for the stacked-K matmul, and cast weights to bf16."""
    C = w3_torch.shape[0]
    Cp = ((C + 127) // 128) * 128
    pc = Cp - C

    scale = gamma / jnp.sqrt(run_var + eps)
    shift = beta - run_mean * scale

    w3 = jnp.transpose(w3_torch, (2, 3, 1, 0)) * scale           # (3,3,Cin,Cout), BN folded
    w3 = jnp.pad(w3, ((0, 0), (0, 0), (0, pc), (0, pc)))
    w3_mat = w3.reshape(9 * Cp, Cp).astype(jnp.bfloat16)          # stacked-K layout

    w1 = jnp.transpose(w1_torch[:, :, 0, 0], (1, 0))              # (Cin, Cout)
    w1_mat = jnp.pad(w1, ((0, pc), (0, pc))).astype(jnp.bfloat16)

    shift2d = jnp.pad(shift, (0, pc))[None, :].astype(jnp.float32)
    bias2d = jnp.pad(b1, (0, pc))[None, :].astype(jnp.float32)
    return (w3_mat, w1_mat, shift2d, bias2d, C, Cp)


def conv_inter_single(x_nhwc, params, *, tile_h=8):
    """Apply the Conv_Inter block to one NHWC feature map."""
    w3_mat, w1_mat, shift, bias, C, Cp = params
    N, H, W, _ = x_nhwc.shape

    tH = min(tile_h, H)               # for production sizes: pick tH so 2x in + 2x out blocks fit VMEM
    nT = pl.cdiv(H, tH)
    H_pad = nT * tH

    # 'same' halo + pad H to a tile multiple + lane-dense channel padding; bf16 input
    # (halves HBM traffic and matches the MXU operand dtype).
    xp = jnp.pad(x_nhwc, ((0, 0), (1, H_pad - H + 1), (1, 1), (0, Cp - C)))
    xp = xp.astype(jnp.bfloat16)
    # Overlapping (halo-carrying) H tiles -> plain Blocked BlockSpecs, no in-kernel masking.
    xt = jnp.stack([xp[:, i * tH:i * tH + tH + 2] for i in range(nT)], axis=1)
    # xt: (N, nT, tH+2, W+2, Cp)

    out = pl.pallas_call(
        _conv_inter_kernel,
        out_shape=jax.ShapeDtypeStruct((N, nT, tH, W, Cp), jnp.float32),
        grid=(N, nT),
        in_specs=[
            pl.BlockSpec((None, None, tH + 2, W + 2, Cp),
                         lambda n, i: (n, i, 0, 0, 0)),            # input tile (with halo)
            pl.BlockSpec((9 * Cp, Cp), lambda n, i: (0, 0)),       # 3x3 weights (stacked-K)
            pl.BlockSpec((Cp, Cp), lambda n, i: (0, 0)),           # 1x1 weights
            pl.BlockSpec((1, Cp), lambda n, i: (0, 0)),            # BN shift
            pl.BlockSpec((1, Cp), lambda n, i: (0, 0)),            # 1x1 bias
        ],
        out_specs=pl.BlockSpec((None, None, tH, W, Cp),
                               lambda n, i: (n, i, 0, 0, 0)),
        compiler_params=pltpu.CompilerParams(
            dimension_semantics=("parallel", "parallel")),         # megacore over batch & H tiles
    )(xt, w3_mat, w1_mat, shift, bias)

    # Drop the H tail padding and the lane-padding channels.
    return out.reshape(N, H_pad, W, Cp)[:, :H, :, :C]


def conv_inter(srcs_nchw, params, *, tile_h=8):
    """Equivalent of Conv_Inter.forward: list of NCHW tensors in/out.
    (In an end-to-end NHWC pipeline the two transposes per map would be dropped.)"""
    outs = []
    for x_nchw in srcs_nchw:
        x_nhwc = jnp.transpose(x_nchw, (0, 2, 3, 1))
        y_nhwc = conv_inter_single(x_nhwc, params, tile_h=tile_h)
        outs.append(jnp.transpose(y_nhwc, (0, 3, 1, 2)))
    return outs


if __name__ == "__main__":
    key = jax.random.PRNGKey(0)
    d_model = 32  # small stand-in for the default 256
    ks = jax.random.split(key, 9)

    # Deterministic parameter init (PyTorch weight layouts, then converted).
    w3_torch = jax.random.normal(ks[0], (d_model, d_model, 3, 3), jnp.float32) * 0.05
    gamma = 1.0 + 0.1 * jax.random.normal(ks[1], (d_model,), jnp.float32)
    beta = 0.1 * jax.random.normal(ks[2], (d_model,), jnp.float32)
    run_mean = 0.1 * jax.random.normal(ks[3], (d_model,), jnp.float32)
    run_var = jax.random.uniform(ks[4], (d_model,), jnp.float32, minval=0.5, maxval=1.5)
    w1_torch = jax.random.normal(ks[5], (d_model, d_model, 1, 1), jnp.float32) * 0.05
    b1 = 0.1 * jax.random.normal(ks[6], (d_model,), jnp.float32)

    params = prepare_params(w3_torch, w1_torch, gamma, beta, run_mean, run_var, b1)

    # `srcs` is a list of multi-scale NCHW feature maps (like the PyTorch module).
    srcs = [
        jax.random.normal(ks[7], (2, d_model, 16, 16), jnp.float32),
        jax.random.normal(ks[8], (2, d_model, 8, 8), jnp.float32),
    ]

    outs = conv_inter(srcs, params)
    outs = jax.block_until_ready(outs)

    # Reference mirroring the module semantics at the same (bf16-operand, f32-accum)
    # matmul precision as the kernel.
    eps = 1e-5
    scale = gamma / jnp.sqrt(run_var + eps)
    shift = beta - run_mean * scale
    w3_hwio = jnp.transpose(w3_torch, (2, 3, 1, 0)) * scale        # BN scale folded, f32
    w1_mat_f32 = jnp.transpose(w1_torch[:, :, 0, 0], (1, 0))

    for x_nchw, y in zip(srcs, outs):
        x_nhwc = jnp.transpose(x_nchw, (0, 2, 3, 1))
        ref = lax.conv_general_dilated(
            x_nhwc.astype(jnp.bfloat16), w3_hwio.astype(jnp.bfloat16),
            window_strides=(1, 1), padding="SAME",
            dimension_numbers=("NHWC", "HWIO", "NHWC"),
            preferred_element_type=jnp.float32)
        ref = jnp.maximum(ref + shift, 0.0)
        ref = jnp.dot(ref.astype(jnp.bfloat16), w1_mat_f32.astype(jnp.bfloat16),
                      preferred_element_type=jnp.float32) + b1
        ref = jnp.transpose(ref, (0, 3, 1, 2))
        assert jnp.allclose(y, ref, atol=2e-2, rtol=2e-2), "mismatch vs reference"

    print("KERNEL_OK")
</pallas_src>

<mosaic_0001>
module attributes {stable_mosaic.version = 11 : i64} {
  func.func @_conv_inter_kernel(%arg0: i32, %arg1: i32, %arg2: memref<1x1x10x18x128xbf16, #tpu.memory_space<vmem>>, %arg3: memref<1152x128xbf16, #tpu.memory_space<vmem>>, %arg4: memref<128x128xbf16, #tpu.memory_space<vmem>>, %arg5: memref<1x128xf32, #tpu.memory_space<vmem>>, %arg6: memref<1x128xf32, #tpu.memory_space<vmem>>, %arg7: memref<1x1x8x16x128xf32, #tpu.memory_space<vmem>>) attributes {dimension_semantics = [#tpu.dimension_semantics<parallel>, #tpu.dimension_semantics<parallel>], iteration_bounds = array<i64: 2, 2>, scalar_prefetch = 0 : i64, scratch_operands = 0 : i64, tpu.core_type = #tpu.core_type<tc>, window_params = [{transform_indices = @transform_0, window_bounds = array<i64: 1, 1, 10, 18, 128>}, {pipeline_mode = #tpu.pipeline_mode<synchronous>, transform_indices = @transform_1, window_bounds = array<i64: 1152, 128>}, {pipeline_mode = #tpu.pipeline_mode<synchronous>, transform_indices = @transform_2, window_bounds = array<i64: 128, 128>}, {pipeline_mode = #tpu.pipeline_mode<synchronous>, transform_indices = @transform_3, window_bounds = array<i64: 1, 128>}, {pipeline_mode = #tpu.pipeline_mode<synchronous>, transform_indices = @transform_4, window_bounds = array<i64: 1, 128>}, {transform_indices = @transform_5, window_bounds = array<i64: 1, 1, 8, 16, 128>}]} {
    %c0 = arith.constant 0 : index
    %c0_0 = arith.constant 0 : index
    %c0_1 = arith.constant 0 : index
    %c0_2 = arith.constant 0 : index
    %c0_3 = arith.constant 0 : index
    %0 = vector.load %arg2[%c0, %c0_0, %c0_1, %c0_2, %c0_3] : memref<1x1x10x18x128xbf16, #tpu.memory_space<vmem>>, vector<1x1x10x18x128xbf16>
    %1 = vector.shape_cast %0 : vector<1x1x10x18x128xbf16> to vector<10x18x128xbf16>
    %2 = vector.extract_strided_slice %1 {offsets = [0, 0, 0], sizes = [8, 16, 128], strides = [1, 1, 1]} : vector<10x18x128xbf16> to vector<8x16x128xbf16>
    %3 = vector.extract_strided_slice %1 {offsets = [0, 1, 0], sizes = [8, 16, 128], strides = [1, 1, 1]} : vector<10x18x128xbf16> to vector<8x16x128xbf16>
    %4 = vector.extract_strided_slice %1 {offsets = [0, 2, 0], sizes = [8, 16, 128], strides = [1, 1, 1]} : vector<10x18x128xbf16> to vector<8x16x128xbf16>
    %5 = vector.extract_strided_slice %1 {offsets = [1, 0, 0], sizes = [8, 16, 128], strides = [1, 1, 1]} : vector<10x18x128xbf16> to vector<8x16x128xbf16>
    %6 = vector.extract_strided_slice %1 {offsets = [1, 1, 0], sizes = [8, 16, 128], strides = [1, 1, 1]} : vector<10x18x128xbf16> to vector<8x16x128xbf16>
    %7 = vector.extract_strided_slice %1 {offsets = [1, 2, 0], sizes = [8, 16, 128], strides = [1, 1, 1]} : vector<10x18x128xbf16> to vector<8x16x128xbf16>
    %8 = vector.extract_strided_slice %1 {offsets = [2, 0, 0], sizes = [8, 16, 128], strides = [1, 1, 1]} : vector<10x18x128xbf16> to vector<8x16x128xbf16>
    %9 = vector.extract_strided_slice %1 {offsets = [2, 1, 0], sizes = [8, 16, 128], strides = [1, 1, 1]} : vector<10x18x128xbf16> to vector<8x16x128xbf16>
    %10 = vector.extract_strided_slice %1 {offsets = [2, 2, 0], sizes = [8, 16, 128], strides = [1, 1, 1]} : vector<10x18x128xbf16> to vector<8x16x128xbf16>
    %11 = tpu.concatenate %2, %3, %4, %5, %6, %7, %8, %9, %10 in 2 : vector<8x16x128xbf16>, vector<8x16x128xbf16>, vector<8x16x128xbf16>, vector<8x16x128xbf16>, vector<8x16x128xbf16>, vector<8x16x128xbf16>, vector<8x16x128xbf16>, vector<8x16x128xbf16>, vector<8x16x128xbf16> -> vector<8x16x1152xbf16>
    %12 = vector.shape_cast %11 : vector<8x16x1152xbf16> to vector<128x1152xbf16>
    %c0_4 = arith.constant 0 : index
    %c0_5 = arith.constant 0 : index
    %13 = vector.load %arg3[%c0_4, %c0_5] : memref<1152x128xbf16, #tpu.memory_space<vmem>>, vector<1152x128xbf16>
    %cst = arith.constant dense<0.000000e+00> : vector<128x128xf32>
    %14 = tpu.matmul %12, %13, %cst {dimension_numbers = #tpu.dot_dimension_numbers<[1], [0], [0], [1], [0, 0, 1, 1], [], []>} : vector<128x1152xbf16>, vector<1152x128xbf16>, vector<128x128xf32> -> vector<128x128xf32>
    %c0_6 = arith.constant 0 : index
    %c0_7 = arith.constant 0 : index
    %15 = vector.load %arg5[%c0_6, %c0_7] : memref<1x128xf32, #tpu.memory_space<vmem>>, vector<1x128xf32>
    %16 = vector.broadcast %15 : vector<1x128xf32> to vector<128x128xf32>
    %17 = arith.addf %14, %16 : vector<128x128xf32>
    %cst_8 = arith.constant 0.000000e+00 : f32
    %18 = vector.broadcast %cst_8 : f32 to vector<128x128xf32>
    %19 = arith.maximumf %17, %18 : vector<128x128xf32>
    %20 = arith.truncf %19 : vector<128x128xf32> to vector<128x128xbf16>
    %c0_9 = arith.constant 0 : index
    %c0_10 = arith.constant 0 : index
    %21 = vector.load %arg4[%c0_9, %c0_10] : memref<128x128xbf16, #tpu.memory_space<vmem>>, vector<128x128xbf16>
    %cst_11 = arith.constant dense<0.000000e+00> : vector<128x128xf32>
    %22 = tpu.matmul %20, %21, %cst_11 {dimension_numbers = #tpu.dot_dimension_numbers<[1], [0], [0], [1], [0, 0, 1, 1], [], []>} : vector<128x128xbf16>, vector<128x128xbf16>, vector<128x128xf32> -> vector<128x128xf32>
    %c0_12 = arith.constant 0 : index
    %c0_13 = arith.constant 0 : index
    %23 = vector.load %arg6[%c0_12, %c0_13] : memref<1x128xf32, #tpu.memory_space<vmem>>, vector<1x128xf32>
    %24 = vector.broadcast %23 : vector<1x128xf32> to vector<128x128xf32>
    %25 = arith.addf %22, %24 : vector<128x128xf32>
    %26 = vector.shape_cast %25 : vector<128x128xf32> to vector<8x16x128xf32>
    %c0_14 = arith.constant 0 : index
    %c0_15 = arith.constant 0 : index
    %c0_16 = arith.constant 0 : index
    %c0_17 = arith.constant 0 : index
    %c0_18 = arith.constant 0 : index
    %27 = vector.load %arg7[%c0_14, %c0_15, %c0_16, %c0_17, %c0_18] : memref<1x1x8x16x128xf32, #tpu.memory_space<vmem>>, vector<1x1x8x16x128xf32>
    %28 = vector.shape_cast %27 : vector<1x1x8x16x128xf32> to vector<8x16x128xf32>
    %29 = vector.shape_cast %26 : vector<8x16x128xf32> to vector<1x1x8x16x128xf32>
    tpu.vector_store %arg7[%c0_14, %c0_15, %c0_16, %c0_17, %c0_18], %29 {strides = array<i32>} : memref<1x1x8x16x128xf32, #tpu.memory_space<vmem>>, vector<1x1x8x16x128xf32>,
    return
  }
  func.func @transform_0(%arg0: i32, %arg1: i32) -> (i32, i32, i32, i32, i32) {
    %c0_i32 = arith.constant 0 : i32
    %c0_i32_0 = arith.constant 0 : i32
    %c0_i32_1 = arith.constant 0 : i32
    %c0_i32_2 = arith.constant 0 : i32
    return %arg0, %arg1, %c0_i32, %c0_i32_0, %c0_i32_1 : i32, i32, i32, i32, i32
  }
  func.func @transform_1(%arg0: i32, %arg1: i32) -> (i32, i32) {
    %c0_i32 = arith.constant 0 : i32
    %c0_i32_0 = arith.constant 0 : i32
    %c0_i32_1 = arith.constant 0 : i32
    return %c0_i32, %c0_i32_0 : i32, i32
  }
  func.func @transform_2(%arg0: i32, %arg1: i32) -> (i32, i32) {
    %c0_i32 = arith.constant 0 : i32
    %c0_i32_0 = arith.constant 0 : i32
    %c0_i32_1 = arith.constant 0 : i32
    return %c0_i32, %c0_i32_0 : i32, i32
  }
  func.func @transform_3(%arg0: i32, %arg1: i32) -> (i32, i32) {
    %c0_i32 = arith.constant 0 : i32
    %c0_i32_0 = arith.constant 0 : i32
    %c0_i32_1 = arith.constant 0 : i32
    return %c0_i32, %c0_i32_0 : i32, i32
  }
  func.func @transform_4(%arg0: i32, %arg1: i32) -> (i32, i32) {
    %c0_i32 = arith.constant 0 : i32
    %c0_i32_0 = arith.constant 0 : i32
    %c0_i32_1 = arith.constant 0 : i32
    return %c0_i32, %c0_i32_0 : i32, i32
  }
  func.func @transform_5(%arg0: i32, %arg1: i32) -> (i32, i32, i32, i32, i32) {
    %c0_i32 = arith.constant 0 : i32
    %c0_i32_0 = arith.constant 0 : i32
    %c0_i32_1 = arith.constant 0 : i32
    %c0_i32_2 = arith.constant 0 : i32
    return %arg0, %arg1, %c0_i32, %c0_i32_0, %c0_i32_1 : i32, i32, i32, i32, i32
  }
}

</mosaic_0001>

<llo_original>
// kernel: tpu_custom_call.1
$region0: #{tpu_custom_call.1}
  #allocation0 [shape = 'u32[]', space=smem, size = 0x4, offset = 0x4, fixed_abs, tag = 'smem constant byte address 0x4 - core index']
  #allocation1 [shape = 'u32[144,128]{1,0:T(1,128)}', space=vmem, size = 0x12000, scoped, tag = 'internal scratch']
  %s0 = inlined_call_operand.vmem [shape: bf16[2,2,10,18,128], index: 0, kind: input, shape index: {}]
  %s1 = inlined_call_operand.vmem [shape: bf16[1152,128], index: 1, kind: input, shape index: {}]
  %s2 = inlined_call_operand.vmem [shape: bf16[128,128], index: 2, kind: input, shape index: {}]
  %s3 = inlined_call_operand.vmem [shape: f32[1,128], index: 3, kind: input, shape index: {}]
  %s4 = inlined_call_operand.vmem [shape: f32[1,128], index: 4, kind: input, shape index: {}]
  %s5 = inlined_call_operand.hbm [shape: f32[2,2,8,16,128], index: 5, kind: output, shape index: {}]
  %s6 = sld [smem:[#allocation0]]
  $region53: #{tpu_custom_call.1} parent=0
    _
  %s8 = ssub.s32 1, %s6
  %s9 = scalar_select 0, %s8, %s6
  $region1: #{tpu_custom_call.1} parent=0
    #allocation2 [shape = 'u8[131072]{0}', space=vmem, size = 0x20000, scoped, tag = 'output window, operand 0']
    #allocation3 [shape = 's32[2]{0}', space=sflag, size = 0x8, scoped, tag = 'scoped memory for tpu_custom_call.1']
    %10 = vsyncpa [#allocation3], 0
    %s11 = scalar_lea.sflag [#allocation3], 1
    %12 = vsyncpa %s11, 0
    loop: start=0, step=1, limit=6
    $region2: #{tpu_custom_call.1} parent=1 // loop_pre_header
      _
    $region3: #{tpu_custom_call.1} parent=1 // loop_header
      %s14 = sphi 0, %s18
      %p15 = scmp.ge.s32.totalorder %s14, 6
      %s21 = sphi 0, %s33
      %s22 = sphi 0, %s29
      %s23 = sphi 0, %s21
      %s24 = sphi 0, %s22
      %s25 = sphi 0, %s23
      %s26 = sphi 0, %s24
      %s38 = sphi 0, %s40
      %s41 = sphi 0, %s38
      %s42 = sphi 0, %s41
      %s58 = sphi 0, %s42
      %s62 = sphi 0, %s62
      %s64 = sphi 0, %s62
      %s65 = sphi 0, %s64
      %s79 = sphi 0, %s65
      %s83 = sphi 0, %s83
      %s85 = sphi 0, %s83
      %s86 = sphi 0, %s85
      %s100 = sphi 0, %s86
      %s104 = sphi 0, %s104
      %s106 = sphi 0, %s104
      %s107 = sphi 0, %s106
      %s121 = sphi 0, %s107
      %s125 = sphi 0, %s125
      %s127 = sphi 0, %s125
      %s128 = sphi 0, %s127
      %s142 = sphi 0, %s128
      %s150 = sphi 0, %s152
      %s153 = sphi 0, %s150
      %s154 = sphi 0, %s153
      %s170 = sphi 0, %s154
    $region4: #{tpu_custom_call.1} parent=1 // loop_header_branch
      %17 = sbr.rel (%p15) target = $region8
    $region5: #{tpu_custom_call.1} parent=1 // loop_body
      %s19 = ssub.s32 %s14, 1
      %s20 = ssub.s32 %s14, 2
      %s27 = sadd.s32 1, %s22
      %p28 = scmp.ge.s32.totalorder %s27, 2
      %s29 = scalar_select %p28, 0, %s27
      %s30 = sadd.s32 1, %s21
      %s31 = scalar_select %p28, %s30, %s21
      %p32 = scmp.ge.s32.totalorder %s31, 2
      %s33 = scalar_select %p32, 0, %s31
      %s34 = ssub.s32 %s21, %s33
      %s35 = ssub.s32 %s22, %s29
      %s36 = sor.u32 %s34, %s35
      %p37 = scmp.eq.s32.totalorder %s36, 0
      %s39 = sadd.s32 %s38, 1
      %s40 = scalar_select %p37, %s38, %s39
      %p43 = pneg %p37
      %p44 = scmp.eq.s32.totalorder %s14, 3
      %p45 = por %p43, %p44
      %p46 = scmp.ne.s32.totalorder %s38, %s41
      %p47 = scmp.eq.s32.totalorder %s14, 0
      %p48 = por %p46, %p47
      %p49 = scmp.ne.s32.totalorder %s38, %s41
      %p50 = scmp.eq.s32.totalorder %s19, 3
      %p51 = por %p49, %p50
      %p52 = scmp.ne.s32.totalorder %s41, %s42
      %p53 = scmp.eq.s32.totalorder %s19, 0
      %p54 = por %p52, %p53
      %p55 = scmp.ne.s32.totalorder %s41, %s42
      %p56 = scmp.eq.s32.totalorder %s20, 3
      %p57 = por %p55, %p56
      %p59 = scmp.ne.s32.totalorder %s42, %s58
      %p60 = scmp.eq.s32.totalorder %s20, 0
      %p61 = por %p59, %p60
      %s63 = sadd.s32 %s62, 1
      %p66 = scmp.eq.s32.totalorder %s14, 3
      %p67 = scmp.ne.s32.totalorder %s62, %s64
      %p68 = scmp.eq.s32.totalorder %s14, 0
      %p69 = por %p67, %p68
      %p70 = scmp.ne.s32.totalorder %s62, %s64
      %p71 = scmp.eq.s32.totalorder %s19, 3
      %p72 = por %p70, %p71
      %p73 = scmp.ne.s32.totalorder %s64, %s65
      %p74 = scmp.eq.s32.totalorder %s19, 0
      %p75 = por %p73, %p74
      %p76 = scmp.ne.s32.totalorder %s64, %s65
      %p77 = scmp.eq.s32.totalorder %s20, 3
      %p78 = por %p76, %p77
      %p80 = scmp.ne.s32.totalorder %s65, %s79
      %p81 = scmp.eq.s32.totalorder %s20, 0
      %p82 = por %p80, %p81
      %s84 = sadd.s32 %s83, 1
      %p87 = scmp.eq.s32.totalorder %s14, 3
      %p88 = scmp.ne.s32.totalorder %s83, %s85
      %p89 = scmp.eq.s32.totalorder %s14, 0
      %p90 = por %p88, %p89
      %p91 = scmp.ne.s32.totalorder %s83, %s85
      %p92 = scmp.eq.s32.totalorder %s19, 3
      %p93 = por %p91, %p92
      %p94 = scmp.ne.s32.totalorder %s85, %s86
      %p95 = scmp.eq.s32.totalorder %s19, 0
      %p96 = por %p94, %p95
      %p97 = scmp.ne.s32.totalorder %s85, %s86
      %p98 = scmp.eq.s32.totalorder %s20, 3
      %p99 = por %p97, %p98
      %p101 = scmp.ne.s32.totalorder %s86, %s100
      %p102 = scmp.eq.s32.totalorder %s20, 0
      %p103 = por %p101, %p102
      %s105 = sadd.s32 %s104, 1
      %p108 = scmp.eq.s32.totalorder %s14, 3
      %p109 = scmp.ne.s32.totalorder %s104, %s106
      %p110 = scmp.eq.s32.totalorder %s14, 0
      %p111 = por %p109, %p110
      %p112 = scmp.ne.s32.totalorder %s104, %s106
      %p113 = scmp.eq.s32.totalorder %s19, 3
      %p114 = por %p112, %p113
      %p115 = scmp.ne.s32.totalorder %s106, %s107
      %p116 = scmp.eq.s32.totalorder %s19, 0
      %p117 = por %p115, %p116
      %p118 = scmp.ne.s32.totalorder %s106, %s107
      %p119 = scmp.eq.s32.totalorder %s20, 3
      %p120 = por %p118, %p119
      %p122 = scmp.ne.s32.totalorder %s107, %s121
      %p123 = scmp.eq.s32.totalorder %s20, 0
      %p124 = por %p122, %p123
      %s126 = sadd.s32 %s125, 1
      %p129 = scmp.eq.s32.totalorder %s14, 3
      %p130 = scmp.ne.s32.totalorder %s125, %s127
      %p131 = scmp.eq.s32.totalorder %s14, 0
      %p132 = por %p130, %p131
      %p133 = scmp.ne.s32.totalorder %s125, %s127
      %p134 = scmp.eq.s32.totalorder %s19, 3
      %p135 = por %p133, %p134
      %p136 = scmp.ne.s32.totalorder %s127, %s128
      %p137 = scmp.eq.s32.totalorder %s19, 0
      %p138 = por %p136, %p137
      %p139 = scmp.ne.s32.totalorder %s127, %s128
      %p140 = scmp.eq.s32.totalorder %s20, 3
      %p141 = por %p139, %p140
      %p143 = scmp.ne.s32.totalorder %s128, %s142
      %p144 = scmp.eq.s32.totalorder %s20, 0
      %p145 = por %p143, %p144
      %s146 = ssub.s32 %s21, %s33
      %s147 = ssub.s32 %s22, %s29
      %s148 = sor.u32 %s146, %s147
      %p149 = scmp.eq.s32.totalorder %s148, 0
      %s151 = sadd.s32 %s150, 1
      %s152 = scalar_select %p149, %s150, %s151
      %p155 = pneg %p149
      %p156 = scmp.eq.s32.totalorder %s14, 3
      %p157 = por %p155, %p156
      %p158 = scmp.ne.s32.totalorder %s150, %s153
      %p159 = scmp.eq.s32.totalorder %s14, 0
      %p160 = por %p158, %p159
      %p161 = scmp.ne.s32.totalorder %s150, %s153
      %p162 = scmp.eq.s32.totalorder %s19, 3
      %p163 = por %p161, %p162
      %p164 = scmp.ne.s32.totalorder %s153, %s154
      %p165 = scmp.eq.s32.totalorder %s19, 0
      %p166 = por %p164, %p165
      %p167 = scmp.ne.s32.totalorder %s153, %s154
      %p168 = scmp.eq.s32.totalorder %s20, 3
      %p169 = por %p167, %p168
      %p171 = scmp.ne.s32.totalorder %s154, %s170
      %p172 = scmp.eq.s32.totalorder %s20, 0
      %p173 = por %p171, %p172
      %p174 = scmp.le.s32.totalorder 1, %s14
      %p175 = scmp.lt.s32.totalorder %s14, 5
      %p176 = pnand %p174, %p175
      %p177 = pneg %p176
      // Predicated region
      $region9: #{tpu_custom_call.1} parent=5 // pred_check
        _
      $region10: #{tpu_custom_call.1} parent=5 // pred_check_branch
        %179 = sbr.rel (%p176) target = $region12
      $region11: #{tpu_custom_call.1} parent=5 // pred_region
        %s180 = ssub.s32 %s14, 1
        // Predicated region
        $region13: #{tpu_custom_call.1} parent=11 // pred_check
          %p181 = pneg %p75
        $region14: #{tpu_custom_call.1} parent=11 // pred_check_branch
          %183 = sbr.rel (%p181) target = $region16
        $region15: #{tpu_custom_call.1} parent=11 // pred_region
          _
        $region16: #{tpu_custom_call.1} parent=11 // pred_fallthru
          _
        // Predicated region
        $region17: #{tpu_custom_call.1} parent=11 // pred_check
          %p184 = pneg %p96
        $region18: #{tpu_custom_call.1} parent=11 // pred_check_branch
          %186 = sbr.rel (%p184) target = $region20
        $region19: #{tpu_custom_call.1} parent=11 // pred_region
          _
        $region20: #{tpu_custom_call.1} parent=11 // pred_fallthru
          _
        // Predicated region
        $region21: #{tpu_custom_call.1} parent=11 // pred_check
          %p187 = pneg %p117
        $region22: #{tpu_custom_call.1} parent=11 // pred_check_branch
          %189 = sbr.rel (%p187) target = $region24
        $region23: #{tpu_custom_call.1} parent=11 // pred_region
          _
        $region24: #{tpu_custom_call.1} parent=11 // pred_fallthru
          _
        // Predicated region
        $region25: #{tpu_custom_call.1} parent=11 // pred_check
          %p190 = pneg %p138
        $region26: #{tpu_custom_call.1} parent=11 // pred_check_branch
          %192 = sbr.rel (%p190) target = $region28
        $region27: #{tpu_custom_call.1} parent=11 // pred_region
          _
        $region28: #{tpu_custom_call.1} parent=11 // pred_fallthru
          _
      $region12: #{tpu_custom_call.1} parent=5 // pred_fallthru
        _
      %p193 = scmp.lt.s32.totalorder %s14, 4
      // Predicated region
      $region29: #{tpu_custom_call.1} parent=5 // pred_check
        %p194 = pneg %p193
      $region30: #{tpu_custom_call.1} parent=5 // pred_check_branch
        %196 = sbr.rel (%p194) target = $region32
      $region31: #{tpu_custom_call.1} parent=5 // pred_region
        // Predicated region
        $region33: #{tpu_custom_call.1} parent=31 // pred_check
          %p197 = pneg %p48
        $region34: #{tpu_custom_call.1} parent=31 // pred_check_branch
          %199 = sbr.rel (%p197) target = $region36
        $region35: #{tpu_custom_call.1} parent=31 // pred_region
          %p200 = scmp.lt.s32.totalorder %s21, 1
          %s201 = scalar_select %p200, %s21, 1
          %p202 = scmp.lt.s32.totalorder %s22, 1
          %s203 = scalar_select %p202, %s22, 1
          %s204 = smul.addr %s203, 30
          %s205 = smul.addr %s201, 60
          %s206 = sadd.s32 %s204, %s205
          %s207 = smul.addr %s206, 4
          %s208 = scalar_lea.vmem %s0, %s207
        $region36: #{tpu_custom_call.1} parent=31 // pred_fallthru
          _
      $region32: #{tpu_custom_call.1} parent=5 // pred_fallthru
        _
      %p209 = scmp.le.s32.totalorder 1, %s14
      %p210 = scmp.lt.s32.totalorder %s14, 5
      %p211 = pnand %p209, %p210
      %p212 = pneg %p211
      // Predicated region
      $region37: #{tpu_custom_call.1} parent=5 // pred_check
        _
      $region38: #{tpu_custom_call.1} parent=5 // pred_check_branch
        %214 = sbr.rel (%p211) target = $region40
      $region39: #{tpu_custom_call.1} parent=5 // pred_region
        %s215 = ssub.s32 %s14, 1
        %p216 = scmp.lt.s32.totalorder %s23, 1
        %s217 = scalar_select %p216, %s23, 1
        %p218 = scmp.lt.s32.totalorder %s24, 1
        %s219 = scalar_select %p218, %s24, 1
        %s220 = smul.addr %s219, 30
        %s221 = smul.addr %s217, 60
        %s222 = sadd.s32 %s220, %s221
        %s223 = smul.addr %s222, 4
        %s224 = scalar_lea.vmem %s0, %s223
        %p225 = pneg %p54
        %p226 = pneg %p51
        %p227 = pneg %p75
        %p228 = pneg %p72
        %p229 = pneg %p96
        %p230 = pneg %p93
        %p231 = pneg %p117
        %p232 = pneg %p114
        %p233 = pneg %p138
        %p234 = pneg %p135
        %p235 = pneg %p166
        %p236 = pneg %p163
        %s237 = sand.u32 %s153, 1
        %s238 = scalar_lea.sflag [#allocation3], %s237
        %s239 = sand.u32 %s153, 1
        %s240 = smul.addr %s239, 128
        %s241 = scalar_lea.vmem [#allocation2], %s240
        %p242 = scmp.lt.s32.totalorder %s23, 1
        %s243 = scalar_select %p242, %s23, 1
        %p244 = scmp.lt.s32.totalorder %s24, 1
        %s245 = scalar_select %p244, %s24, 1
        %s246 = smul.addr %s245, 30
        %s247 = smul.addr %s243, 60
        %s248 = sadd.s32 %s246, %s247
        %s249 = smul.addr %s248, 4
        %s250 = scalar_lea.vmem %s0, %s249
        %v252 = vld [vmem:[%s250] sm:$0xf]
        %v253 = vld [vmem:[%s250 + $0x4] sm:$0xf]
        %v254 = vld [vmem:[%s250 + $0x8] sm:$0x1]
        %v255 = vld [vmem:[%s250 + $0xc] sm:$0xf]
        %v256 = vld [vmem:[%s250 + $0x10] sm:$0xf]
        %v257 = vld [vmem:[%s250 + $0x14] sm:$0x1]
        %v258 = vld [vmem:[%s250 + $0x18] sm:$0xf]
        %v259 = vld [vmem:[%s250 + $0x1c] sm:$0xf]
        %v260 = vld [vmem:[%s250 + $0x20] sm:$0x1]
        %v261 = vld [vmem:[%s250 + $0x24] sm:$0xf]
        %v262 = vld [vmem:[%s250 + $0x28] sm:$0xf]
        %v263 = vld [vmem:[%s250 + $0x2c] sm:$0x1]
        %v264 = vld [vmem:[%s250 + $0x30] sm:$0xf]
        %v265 = vld [vmem:[%s250 + $0x34] sm:$0xf]
        %v266 = vld [vmem:[%s250 + $0x38] sm:$0x1]
        %v267 = vld [vmem:[%s250 + $0x3c] sm:$0xf]
        %v268 = vld [vmem:[%s250 + $0x40] sm:$0xf]
        %v269 = vld [vmem:[%s250 + $0x44] sm:$0x1]
        %v270 = vld [vmem:[%s250 + $0x48] sm:$0xf]
        %v271 = vld [vmem:[%s250 + $0x4c] sm:$0xf]
        %v272 = vld [vmem:[%s250 + $0x50] sm:$0x1]
        %v273 = vld [vmem:[%s250 + $0x54] sm:$0xf]
        %v274 = vld [vmem:[%s250 + $0x58] sm:$0xf]
        %v275 = vld [vmem:[%s250 + $0x5c] sm:$0x1]
        %v276 = vld [vmem:[%s250 + $0x60] sm:$0xf]
        %v277 = vld [vmem:[%s250 + $0x64] sm:$0xf]
        %v278 = vld [vmem:[%s250 + $0x68] sm:$0x1]
        %v279 = vld [vmem:[%s250 + $0x6c] sm:$0xf]
        %v280 = vld [vmem:[%s250 + $0x70] sm:$0xf]
        %v281 = vld [vmem:[%s250 + $0x74] sm:$0x1]
        %v298 = vunpack.c.l.b16 %v252
        %v299 = vunpack.c.l.b16 %v253
        %v300 = vunpack.c.l.b16 %v255
        %v301 = vunpack.c.l.b16 %v256
        %v302 = vunpack.c.l.b16 %v258
        %v303 = vunpack.c.l.b16 %v259
        %v304 = vunpack.c.l.b16 %v261
        %v305 = vunpack.c.l.b16 %v262
        %v306 = vunpack.c.l.b16 %v264
        %v307 = vunpack.c.l.b16 %v265
        %v308 = vunpack.c.l.b16 %v267
        %v309 = vunpack.c.l.b16 %v268
        %v310 = vunpack.c.l.b16 %v270
        %v311 = vunpack.c.l.b16 %v271
        %v312 = vunpack.c.l.b16 %v273
        %v313 = vunpack.c.l.b16 %v274
        %v314 = vpack.c.b16 %v299, %v298
        %v315 = vpack.c.b16 %v301, %v300
        %v316 = vpack.c.b16 %v303, %v302
        %v317 = vpack.c.b16 %v305, %v304
        %v318 = vpack.c.b16 %v307, %v306
        %v319 = vpack.c.b16 %v309, %v308
        %v320 = vpack.c.b16 %v311, %v310
        %v321 = vpack.c.b16 %v313, %v312
        %v338 = vunpack.c.l.b16 %v254
        %v339 = vunpack.c.l.b16 %v257
        %v340 = vunpack.c.l.b16 %v260
        %v341 = vunpack.c.l.b16 %v263
        %v342 = vunpack.c.l.b16 %v266
        %v343 = vunpack.c.l.b16 %v269
        %v344 = vunpack.c.l.b16 %v272
        %v345 = vunpack.c.l.b16 %v275
        %v346 = vpack.c.b16 %v338, %v338
        %v347 = vpack.c.b16 %v339, %v339
        %v348 = vpack.c.b16 %v340, %v340
        %v349 = vpack.c.b16 %v341, %v341
        %v350 = vpack.c.b16 %v342, %v342
        %v351 = vpack.c.b16 %v343, %v343
        %v352 = vpack.c.b16 %v344, %v344
        %v353 = vpack.c.b16 %v345, %v345
        %vm354 = vsmask.f32 7424
        %v356 = vshrl.u32 %v314, 16
        %v358 = vshll.u32 %v314, 16
        %v360 = vrot.slane %v358, 1
        %v361 = vor.u32 %v356, %v360
        %v363 = vshll.u32 %v346, 16
        %v365 = vrot.slane %v363, 1
        %v366 = vsel %vm354, %v361, %v365
        %v368 = vshrl.u32 %v315, 16
        %v370 = vshll.u32 %v315, 16
        %v372 = vrot.slane %v370, 1
        %v373 = vor.u32 %v368, %v372
        %v375 = vshll.u32 %v347, 16
        %v377 = vrot.slane %v375, 1
        %v378 = vsel %vm354, %v373, %v377
        %v380 = vshrl.u32 %v316, 16
        %v382 = vshll.u32 %v316, 16
        %v384 = vrot.slane %v382, 1
        %v385 = vor.u32 %v380, %v384
        %v387 = vshll.u32 %v348, 16
        %v389 = vrot.slane %v387, 1
        %v390 = vsel %vm354, %v385, %v389
        %v392 = vshrl.u32 %v317, 16
        %v394 = vshll.u32 %v317, 16
        %v396 = vrot.slane %v394, 1
        %v397 = vor.u32 %v392, %v396
        %v399 = vshll.u32 %v349, 16
        %v401 = vrot.slane %v399, 1
        %v402 = vsel %vm354, %v397, %v401
        %v404 = vshrl.u32 %v318, 16
        %v406 = vshll.u32 %v318, 16
        %v408 = vrot.slane %v406, 1
        %v409 = vor.u32 %v404, %v408
        %v411 = vshll.u32 %v350, 16
        %v413 = vrot.slane %v411, 1
        %v414 = vsel %vm354, %v409, %v413
        %v416 = vshrl.u32 %v319, 16
        %v418 = vshll.u32 %v319, 16
        %v420 = vrot.slane %v418, 1
        %v421 = vor.u32 %v416, %v420
        %v423 = vshll.u32 %v351, 16
        %v425 = vrot.slane %v423, 1
        %v426 = vsel %vm354, %v421, %v425
        %v428 = vshrl.u32 %v320, 16
        %v430 = vshll.u32 %v320, 16
        %v432 = vrot.slane %v430, 1
        %v433 = vor.u32 %v428, %v432
        %v435 = vshll.u32 %v352, 16
        %v437 = vrot.slane %v435, 1
        %v438 = vsel %vm354, %v433, %v437
        %v440 = vshrl.u32 %v321, 16
        %v442 = vshll.u32 %v321, 16
        %v444 = vrot.slane %v442, 1
        %v445 = vor.u32 %v440, %v444
        %v447 = vshll.u32 %v353, 16
        %v449 = vrot.slane %v447, 1
        %v450 = vsel %vm354, %v445, %v449
        %vm459 = vcmask 1046528
        %v460 = vrot.slane %v314, 1
        %v461 = vrot.slane %v346, 1
        %v462 = vsel %vm459, %v460, %v461
        %v463 = vrot.slane %v315, 1
        %v464 = vrot.slane %v347, 1
        %v465 = vsel %vm459, %v463, %v464
        %v466 = vrot.slane %v316, 1
        %v467 = vrot.slane %v348, 1
        %v468 = vsel %vm459, %v466, %v467
        %v469 = vrot.slane %v317, 1
        %v470 = vrot.slane %v349, 1
        %v471 = vsel %vm459, %v469, %v470
        %v472 = vrot.slane %v318, 1
        %v473 = vrot.slane %v350, 1
        %v474 = vsel %vm459, %v472, %v473
        %v475 = vrot.slane %v319, 1
        %v476 = vrot.slane %v351, 1
        %v477 = vsel %vm459, %v475, %v476
        %v478 = vrot.slane %v320, 1
        %v479 = vrot.slane %v352, 1
        %v480 = vsel %vm459, %v478, %v479
        %v481 = vrot.slane %v321, 1
        %v482 = vrot.slane %v353, 1
        %v483 = vsel %vm459, %v481, %v482
        %v494 = vunpack.c.l.b16 %v276
        %v495 = vunpack.c.l.b16 %v277
        %v496 = vpack.c.b16 %v495, %v494
        %v499 = vunpack.c.l.b16 %v278
        %v500 = vpack.c.b16 %v499, %v499
        %v502 = vshrl.u32 %v496, 16
        %v504 = vshll.u32 %v496, 16
        %v506 = vrot.slane %v504, 1
        %v507 = vor.u32 %v502, %v506
        %v509 = vshll.u32 %v500, 16
        %v511 = vrot.slane %v509, 1
        %v512 = vsel %vm354, %v507, %v511
        %v514 = vrot.slane %v496, 1
        %v515 = vrot.slane %v500, 1
        %v516 = vsel %vm459, %v514, %v515
        %v520 = vunpack.c.l.b16 %v279
        %v521 = vunpack.c.l.b16 %v280
        %v522 = vpack.c.b16 %v521, %v520
        %v525 = vunpack.c.l.b16 %v281
        %v526 = vpack.c.b16 %v525, %v525
        %v528 = vshrl.u32 %v522, 16
        %v530 = vshll.u32 %v522, 16
        %v532 = vrot.slane %v530, 1
        %v533 = vor.u32 %v528, %v532
        %v535 = vshll.u32 %v526, 16
        %v537 = vrot.slane %v535, 1
        %v538 = vsel %vm354, %v533, %v537
        %v540 = vrot.slane %v522, 1
        %v541 = vrot.slane %v526, 1
        %v542 = vsel %vm459, %v540, %v541
        %v544 = vld [vmem:[%s1] sm:$0xf]
        %v545 = vld [vmem:[%s1 + $0x4] sm:$0xf]
        %v546 = vld [vmem:[%s1 + $0x8] sm:$0xf]
        %v547 = vld [vmem:[%s1 + $0xc] sm:$0xf]
        %v548 = vld [vmem:[%s1 + $0x10] sm:$0xf]
        %v549 = vld [vmem:[%s1 + $0x14] sm:$0xf]
        %v550 = vld [vmem:[%s1 + $0x18] sm:$0xf]
        %v551 = vld [vmem:[%s1 + $0x1c] sm:$0xf]
        %v552 = vld [vmem:[%s1 + $0x20] sm:$0xf]
        %v553 = vld [vmem:[%s1 + $0x24] sm:$0xf]
        %v554 = vld [vmem:[%s1 + $0x28] sm:$0xf]
        %v555 = vld [vmem:[%s1 + $0x2c] sm:$0xf]
        %v556 = vld [vmem:[%s1 + $0x30] sm:$0xf]
        %v557 = vld [vmem:[%s1 + $0x34] sm:$0xf]
        %v558 = vld [vmem:[%s1 + $0x38] sm:$0xf]
        %v559 = vld [vmem:[%s1 + $0x3c] sm:$0xf]
        %v560 = vld [vmem:[%s1 + $0x40] sm:$0xf]
        %v561 = vld [vmem:[%s1 + $0x44] sm:$0xf]
        %v562 = vld [vmem:[%s1 + $0x48] sm:$0xf]
        %v563 = vld [vmem:[%s1 + $0x4c] sm:$0xf]
        %v564 = vld [vmem:[%s1 + $0x50] sm:$0xf]
        %v565 = vld [vmem:[%s1 + $0x54] sm:$0xf]
        %v566 = vld [vmem:[%s1 + $0x58] sm:$0xf]
        %v567 = vld [vmem:[%s1 + $0x5c] sm:$0xf]
        %v568 = vld [vmem:[%s1 + $0x60] sm:$0xf]
        %v569 = vld [vmem:[%s1 + $0x64] sm:$0xf]
        %v570 = vld [vmem:[%s1 + $0x68] sm:$0xf]
        %v571 = vld [vmem:[%s1 + $0x6c] sm:$0xf]
        %v572 = vld [vmem:[%s1 + $0x70] sm:$0xf]
        %v573 = vld [vmem:[%s1 + $0x74] sm:$0xf]
        %v574 = vld [vmem:[%s1 + $0x78] sm:$0xf]
        %v575 = vld [vmem:[%s1 + $0x7c] sm:$0xf]
        %v576 = vld [vmem:[%s1 + $0x80] sm:$0xf]
        %v577 = vld [vmem:[%s1 + $0x84] sm:$0xf]
        %v578 = vld [vmem:[%s1 + $0x88] sm:$0xf]
        %v579 = vld [vmem:[%s1 + $0x8c] sm:$0xf]
        %v580 = vld [vmem:[%s1 + $0x90] sm:$0xf]
        %v581 = vld [vmem:[%s1 + $0x94] sm:$0xf]
        %v582 = vld [vmem:[%s1 + $0x98] sm:$0xf]
        %v583 = vld [vmem:[%s1 + $0x9c] sm:$0xf]
        %v584 = vld [vmem:[%s1 + $0xa0] sm:$0xf]
        %v585 = vld [vmem:[%s1 + $0xa4] sm:$0xf]
        %v586 = vld [vmem:[%s1 + $0xa8] sm:$0xf]
        %v587 = vld [vmem:[%s1 + $0xac] sm:$0xf]
        %v588 = vld [vmem:[%s1 + $0xb0] sm:$0xf]
        %v589 = vld [vmem:[%s1 + $0xb4] sm:$0xf]
        %v590 = vld [vmem:[%s1 + $0xb8] sm:$0xf]
        %v591 = vld [vmem:[%s1 + $0xbc] sm:$0xf]
        %v592 = vld [vmem:[%s1 + $0xc0] sm:$0xf]
        %v593 = vld [vmem:[%s1 + $0xc4] sm:$0xf]
        %v594 = vld [vmem:[%s1 + $0xc8] sm:$0xf]
        %v595 = vld [vmem:[%s1 + $0xcc] sm:$0xf]
        %v596 = vld [vmem:[%s1 + $0xd0] sm:$0xf]
        %v597 = vld [vmem:[%s1 + $0xd4] sm:$0xf]
        %v598 = vld [vmem:[%s1 + $0xd8] sm:$0xf]
        %v599 = vld [vmem:[%s1 + $0xdc] sm:$0xf]
        %v600 = vld [vmem:[%s1 + $0xe0] sm:$0xf]
        %v601 = vld [vmem:[%s1 + $0xe4] sm:$0xf]
        %v602 = vld [vmem:[%s1 + $0xe8] sm:$0xf]
        %v603 = vld [vmem:[%s1 + $0xec] sm:$0xf]
        %v604 = vld [vmem:[%s1 + $0xf0] sm:$0xf]
        %v605 = vld [vmem:[%s1 + $0xf4] sm:$0xf]
        %v606 = vld [vmem:[%s1 + $0xf8] sm:$0xf]
        %v607 = vld [vmem:[%s1 + $0xfc] sm:$0xf]
        %v608 = vld [vmem:[%s1 + $0x100] sm:$0xf]
        %v609 = vld [vmem:[%s1 + $0x104] sm:$0xf]
        %v610 = vld [vmem:[%s1 + $0x108] sm:$0xf]
        %v611 = vld [vmem:[%s1 + $0x10c] sm:$0xf]
        %v612 = vld [vmem:[%s1 + $0x110] sm:$0xf]
        %v613 = vld [vmem:[%s1 + $0x114] sm:$0xf]
        %v614 = vld [vmem:[%s1 + $0x118] sm:$0xf]
        %v615 = vld [vmem:[%s1 + $0x11c] sm:$0xf]
        %v616 = vld [vmem:[%s1 + $0x120] sm:$0xf]
        %v617 = vld [vmem:[%s1 + $0x124] sm:$0xf]
        %v618 = vld [vmem:[%s1 + $0x128] sm:$0xf]
        %v619 = vld [vmem:[%s1 + $0x12c] sm:$0xf]
        %v620 = vld [vmem:[%s1 + $0x130] sm:$0xf]
        %v621 = vld [vmem:[%s1 + $0x134] sm:$0xf]
        %v622 = vld [vmem:[%s1 + $0x138] sm:$0xf]
        %v623 = vld [vmem:[%s1 + $0x13c] sm:$0xf]
        %v624 = vld [vmem:[%s1 + $0x140] sm:$0xf]
        %v625 = vld [vmem:[%s1 + $0x144] sm:$0xf]
        %v626 = vld [vmem:[%s1 + $0x148] sm:$0xf]
        %v627 = vld [vmem:[%s1 + $0x14c] sm:$0xf]
        %v628 = vld [vmem:[%s1 + $0x150] sm:$0xf]
        %v629 = vld [vmem:[%s1 + $0x154] sm:$0xf]
        %v630 = vld [vmem:[%s1 + $0x158] sm:$0xf]
        %v631 = vld [vmem:[%s1 + $0x15c] sm:$0xf]
        %v632 = vld [vmem:[%s1 + $0x160] sm:$0xf]
        %v633 = vld [vmem:[%s1 + $0x164] sm:$0xf]
        %v634 = vld [vmem:[%s1 + $0x168] sm:$0xf]
        %v635 = vld [vmem:[%s1 + $0x16c] sm:$0xf]
        %v636 = vld [vmem:[%s1 + $0x170] sm:$0xf]
        %v637 = vld [vmem:[%s1 + $0x174] sm:$0xf]
        %v638 = vld [vmem:[%s1 + $0x178] sm:$0xf]
        %v639 = vld [vmem:[%s1 + $0x17c] sm:$0xf]
        %v640 = vld [vmem:[%s1 + $0x180] sm:$0xf]
        %v641 = vld [vmem:[%s1 + $0x184] sm:$0xf]
        %v642 = vld [vmem:[%s1 + $0x188] sm:$0xf]
        %v643 = vld [vmem:[%s1 + $0x18c] sm:$0xf]
        %v644 = vld [vmem:[%s1 + $0x190] sm:$0xf]
        %v645 = vld [vmem:[%s1 + $0x194] sm:$0xf]
        %v646 = vld [vmem:[%s1 + $0x198] sm:$0xf]
        %v647 = vld [vmem:[%s1 + $0x19c] sm:$0xf]
        %v648 = vld [vmem:[%s1 + $0x1a0] sm:$0xf]
        %v649 = vld [vmem:[%s1 + $0x1a4] sm:$0xf]
        %v650 = vld [vmem:[%s1 + $0x1a8] sm:$0xf]
        %v651 = vld [vmem:[%s1 + $0x1ac] sm:$0xf]
        %v652 = vld [vmem:[%s1 + $0x1b0] sm:$0xf]
        %v653 = vld [vmem:[%s1 + $0x1b4] sm:$0xf]
        %v654 = vld [vmem:[%s1 + $0x1b8] sm:$0xf]
        %v655 = vld [vmem:[%s1 + $0x1bc] sm:$0xf]
        %v656 = vld [vmem:[%s1 + $0x1c0] sm:$0xf]
        %v657 = vld [vmem:[%s1 + $0x1c4] sm:$0xf]
        %v658 = vld [vmem:[%s1 + $0x1c8] sm:$0xf]
        %v659 = vld [vmem:[%s1 + $0x1cc] sm:$0xf]
        %v660 = vld [vmem:[%s1 + $0x1d0] sm:$0xf]
        %v661 = vld [vmem:[%s1 + $0x1d4] sm:$0xf]
        %v662 = vld [vmem:[%s1 + $0x1d8] sm:$0xf]
        %v663 = vld [vmem:[%s1 + $0x1dc] sm:$0xf]
        %v664 = vld [vmem:[%s1 + $0x1e0] sm:$0xf]
        %v665 = vld [vmem:[%s1 + $0x1e4] sm:$0xf]
        %v666 = vld [vmem:[%s1 + $0x1e8] sm:$0xf]
        %v667 = vld [vmem:[%s1 + $0x1ec] sm:$0xf]
        %v668 = vld [vmem:[%s1 + $0x1f0] sm:$0xf]
        %v669 = vld [vmem:[%s1 + $0x1f4] sm:$0xf]
        %v670 = vld [vmem:[%s1 + $0x1f8] sm:$0xf]
        %v671 = vld [vmem:[%s1 + $0x1fc] sm:$0xf]
        %v672 = vld [vmem:[%s1 + $0x200] sm:$0xf]
        %v673 = vld [vmem:[%s1 + $0x204] sm:$0xf]
        %v674 = vld [vmem:[%s1 + $0x208] sm:$0xf]
        %v675 = vld [vmem:[%s1 + $0x20c] sm:$0xf]
        %v676 = vld [vmem:[%s1 + $0x210] sm:$0xf]
        %v677 = vld [vmem:[%s1 + $0x214] sm:$0xf]
        %v678 = vld [vmem:[%s1 + $0x218] sm:$0xf]
        %v679 = vld [vmem:[%s1 + $0x21c] sm:$0xf]
        %v680 = vld [vmem:[%s1 + $0x220] sm:$0xf]
        %v681 = vld [vmem:[%s1 + $0x224] sm:$0xf]
        %v682 = vld [vmem:[%s1 + $0x228] sm:$0xf]
        %v683 = vld [vmem:[%s1 + $0x22c] sm:$0xf]
        %v684 = vld [vmem:[%s1 + $0x230] sm:$0xf]
        %v685 = vld [vmem:[%s1 + $0x234] sm:$0xf]
        %v686 = vld [vmem:[%s1 + $0x238] sm:$0xf]
        %v687 = vld [vmem:[%s1 + $0x23c] sm:$0xf]
        %v688 = vld [vmem:[%s3] sm:$0x1]
        %v690 = vlaneseq
        %v691 = vshrl.u32 %v690, 7
        %v692 = vsub.s32 0, %v691
        %v693 = vrot.slane %v688, %v692
        %v839 = vunpack.c.l.b16 %v544
        %v840 = vunpack.c.l.b16 %v545
        %v841 = vunpack.c.l.b16 %v546
        %v842 = vunpack.c.l.b16 %v547
        %v843 = vunpack.c.l.b16 %v548
        %v844 = vunpack.c.l.b16 %v549
        %v845 = vunpack.c.l.b16 %v550
        %v846 = vunpack.c.l.b16 %v551
        %v847 = vunpack.c.l.b16 %v552
        %v848 = vunpack.c.l.b16 %v553
        %v849 = vunpack.c.l.b16 %v554
        %v850 = vunpack.c.l.b16 %v555
        %v851 = vunpack.c.l.b16 %v556
        %v852 = vunpack.c.l.b16 %v557
        %v853 = vunpack.c.l.b16 %v558
        %v854 = vunpack.c.l.b16 %v559
        %v855 = vunpack.c.l.b16 %v560
        %v856 = vunpack.c.l.b16 %v561
        %v857 = vunpack.c.l.b16 %v562
        %v858 = vunpack.c.l.b16 %v563
        %v859 = vunpack.c.l.b16 %v564
        %v860 = vunpack.c.l.b16 %v565
        %v861 = vunpack.c.l.b16 %v566
        %v862 = vunpack.c.l.b16 %v567
        %v863 = vunpack.c.l.b16 %v568
        %v864 = vunpack.c.l.b16 %v569
        %v865 = vunpack.c.l.b16 %v570
        %v866 = vunpack.c.l.b16 %v571
        %v867 = vunpack.c.l.b16 %v572
        %v868 = vunpack.c.l.b16 %v573
        %v869 = vunpack.c.l.b16 %v574
        %v870 = vunpack.c.l.b16 %v575
        %v871 = vunpack.c.l.b16 %v576
        %v872 = vunpack.c.l.b16 %v577
        %v873 = vunpack.c.l.b16 %v578
        %v874 = vunpack.c.l.b16 %v579
        %v875 = vunpack.c.l.b16 %v580
        %v876 = vunpack.c.l.b16 %v581
        %v877 = vunpack.c.l.b16 %v582
        %v878 = vunpack.c.l.b16 %v583
        %v879 = vunpack.c.l.b16 %v584
        %v880 = vunpack.c.l.b16 %v585
        %v881 = vunpack.c.l.b16 %v586
        %v882 = vunpack.c.l.b16 %v587
        %v883 = vunpack.c.l.b16 %v588
        %v884 = vunpack.c.l.b16 %v589
        %v885 = vunpack.c.l.b16 %v590
        %v886 = vunpack.c.l.b16 %v591
        %v887 = vunpack.c.l.b16 %v592
        %v888 = vunpack.c.l.b16 %v593
        %v889 = vunpack.c.l.b16 %v594
        %v890 = vunpack.c.l.b16 %v595
        %v891 = vunpack.c.l.b16 %v596
        %v892 = vunpack.c.l.b16 %v597
        %v893 = vunpack.c.l.b16 %v598
        %v894 = vunpack.c.l.b16 %v599
        %v895 = vunpack.c.l.b16 %v600
        %v896 = vunpack.c.l.b16 %v601
        %v897 = vunpack.c.l.b16 %v602
        %v898 = vunpack.c.l.b16 %v603
        %v899 = vunpack.c.l.b16 %v604
        %v900 = vunpack.c.l.b16 %v605
        %v901 = vunpack.c.l.b16 %v606
        %v902 = vunpack.c.l.b16 %v607
        %v903 = vunpack.c.l.b16 %v608
        %v904 = vunpack.c.l.b16 %v609
        %v905 = vunpack.c.l.b16 %v610
        %v906 = vunpack.c.l.b16 %v611
        %v907 = vunpack.c.l.b16 %v612
        %v908 = vunpack.c.l.b16 %v613
        %v909 = vunpack.c.l.b16 %v614
        %v910 = vunpack.c.l.b16 %v615
        %v911 = vunpack.c.l.b16 %v616
        %v912 = vunpack.c.l.b16 %v617
        %v913 = vunpack.c.l.b16 %v618
        %v914 = vunpack.c.l.b16 %v619
        %v915 = vunpack.c.l.b16 %v620
        %v916 = vunpack.c.l.b16 %v621
        %v917 = vunpack.c.l.b16 %v622
        %v918 = vunpack.c.l.b16 %v623
        %v919 = vunpack.c.l.b16 %v624
        %v920 = vunpack.c.l.b16 %v625
        %v921 = vunpack.c.l.b16 %v626
        %v922 = vunpack.c.l.b16 %v627
        %v923 = vunpack.c.l.b16 %v628
        %v924 = vunpack.c.l.b16 %v629
        %v925 = vunpack.c.l.b16 %v630
        %v926 = vunpack.c.l.b16 %v631
        %v927 = vunpack.c.l.b16 %v632
        %v928 = vunpack.c.l.b16 %v633
        %v929 = vunpack.c.l.b16 %v634
        %v930 = vunpack.c.l.b16 %v635
        %v931 = vunpack.c.l.b16 %v636
        %v932 = vunpack.c.l.b16 %v637
        %v933 = vunpack.c.l.b16 %v638
        %v934 = vunpack.c.l.b16 %v639
        %v935 = vunpack.c.l.b16 %v640
        %v936 = vunpack.c.l.b16 %v641
        %v937 = vunpack.c.l.b16 %v642
        %v938 = vunpack.c.l.b16 %v643
        %v939 = vunpack.c.l.b16 %v644
        %v940 = vunpack.c.l.b16 %v645
        %v941 = vunpack.c.l.b16 %v646
        %v942 = vunpack.c.l.b16 %v647
        %v943 = vunpack.c.l.b16 %v648
        %v944 = vunpack.c.l.b16 %v649
        %v945 = vunpack.c.l.b16 %v650
        %v946 = vunpack.c.l.b16 %v651
        %v947 = vunpack.c.l.b16 %v652
        %v948 = vunpack.c.l.b16 %v653
        %v949 = vunpack.c.l.b16 %v654
        %v950 = vunpack.c.l.b16 %v655
        %v951 = vunpack.c.l.b16 %v656
        %v952 = vunpack.c.l.b16 %v657
        %v953 = vunpack.c.l.b16 %v658
        %v954 = vunpack.c.l.b16 %v659
        %v955 = vunpack.c.l.b16 %v660
        %v956 = vunpack.c.l.b16 %v661
        %v957 = vunpack.c.l.b16 %v662
        %v958 = vunpack.c.l.b16 %v663
        %v959 = vunpack.c.l.b16 %v664
        %v960 = vunpack.c.l.b16 %v665
        %v961 = vunpack.c.l.b16 %v666
        %v962 = vunpack.c.l.b16 %v667
        %v963 = vunpack.c.l.b16 %v668
        %v964 = vunpack.c.l.b16 %v669
        %v965 = vunpack.c.l.b16 %v670
        %v966 = vunpack.c.l.b16 %v671
        %v967 = vunpack.c.l.b16 %v672
        %v968 = vunpack.c.l.b16 %v673
        %v969 = vunpack.c.l.b16 %v674
        %v970 = vunpack.c.l.b16 %v675
        %v971 = vunpack.c.l.b16 %v676
        %v972 = vunpack.c.l.b16 %v677
        %v973 = vunpack.c.l.b16 %v678
        %v974 = vunpack.c.l.b16 %v679
        %v975 = vunpack.c.l.b16 %v680
        %v976 = vunpack.c.l.b16 %v681
        %v977 = vunpack.c.l.b16 %v682
        %v978 = vunpack.c.l.b16 %v683
        %v979 = vunpack.c.l.b16 %v684
        %v980 = vunpack.c.l.b16 %v685
        %v981 = vunpack.c.l.b16 %v686
        %v982 = vunpack.c.l.b16 %v687
        %v983 = vpack.c.b16 %v840, %v839
        %v984 = vpack.c.b16 %v842, %v841
        %v985 = vpack.c.b16 %v844, %v843
        %v986 = vpack.c.b16 %v846, %v845
        %v987 = vpack.c.b16 %v848, %v847
        %v988 = vpack.c.b16 %v850, %v849
        %v989 = vpack.c.b16 %v852, %v851
        %v990 = vpack.c.b16 %v854, %v853
        %v991 = vpack.c.b16 %v856, %v855
        %v992 = vpack.c.b16 %v858, %v857
        %v993 = vpack.c.b16 %v860, %v859
        %v994 = vpack.c.b16 %v862, %v861
        %v995 = vpack.c.b16 %v864, %v863
        %v996 = vpack.c.b16 %v866, %v865
        %v997 = vpack.c.b16 %v868, %v867
        %v998 = vpack.c.b16 %v870, %v869
        %v999 = vpack.c.b16 %v872, %v871
        %v1000 = vpack.c.b16 %v874, %v873
        %v1001 = vpack.c.b16 %v876, %v875
        %v1002 = vpack.c.b16 %v878, %v877
        %v1003 = vpack.c.b16 %v880, %v879
        %v1004 = vpack.c.b16 %v882, %v881
        %v1005 = vpack.c.b16 %v884, %v883
        %v1006 = vpack.c.b16 %v886, %v885
        %v1007 = vpack.c.b16 %v888, %v887
        %v1008 = vpack.c.b16 %v890, %v889
        %v1009 = vpack.c.b16 %v892, %v891
        %v1010 = vpack.c.b16 %v894, %v893
        %v1011 = vpack.c.b16 %v896, %v895
        %v1012 = vpack.c.b16 %v898, %v897
        %v1013 = vpack.c.b16 %v900, %v899
        %v1014 = vpack.c.b16 %v902, %v901
        %v1015 = vpack.c.b16 %v904, %v903
        %v1016 = vpack.c.b16 %v906, %v905
        %v1017 = vpack.c.b16 %v908, %v907
        %v1018 = vpack.c.b16 %v910, %v909
        %v1019 = vpack.c.b16 %v912, %v911
        %v1020 = vpack.c.b16 %v914, %v913
        %v1021 = vpack.c.b16 %v916, %v915
        %v1022 = vpack.c.b16 %v918, %v917
        %v1023 = vpack.c.b16 %v920, %v919
        %v1024 = vpack.c.b16 %v922, %v921
        %v1025 = vpack.c.b16 %v924, %v923
        %v1026 = vpack.c.b16 %v926, %v925
        %v1027 = vpack.c.b16 %v928, %v927
        %v1028 = vpack.c.b16 %v930, %v929
        %v1029 = vpack.c.b16 %v932, %v931
        %v1030 = vpack.c.b16 %v934, %v933
        %v1031 = vpack.c.b16 %v936, %v935
        %v1032 = vpack.c.b16 %v938, %v937
        %v1033 = vpack.c.b16 %v940, %v939
        %v1034 = vpack.c.b16 %v942, %v941
        %v1035 = vpack.c.b16 %v944, %v943
        %v1036 = vpack.c.b16 %v946, %v945
        %v1037 = vpack.c.b16 %v948, %v947
        %v1038 = vpack.c.b16 %v950, %v949
        %v1039 = vpack.c.b16 %v952, %v951
        %v1040 = vpack.c.b16 %v954, %v953
        %v1041 = vpack.c.b16 %v956, %v955
        %v1042 = vpack.c.b16 %v958, %v957
        %v1043 = vpack.c.b16 %v960, %v959
        %v1044 = vpack.c.b16 %v962, %v961
        %v1045 = vpack.c.b16 %v964, %v963
        %v1046 = vpack.c.b16 %v966, %v965
        %v1047 = vpack.c.b16 %v968, %v967
        %v1048 = vpack.c.b16 %v970, %v969
        %v1049 = vpack.c.b16 %v972, %v971
        %v1050 = vpack.c.b16 %v974, %v973
        %v1051 = vpack.c.b16 %v976, %v975
        %v1052 = vpack.c.b16 %v978, %v977
        %v1053 = vpack.c.b16 %v980, %v979
        %v1054 = vpack.c.b16 %v982, %v981
        %1127 = vmatprep.subr.bf16.mxu0 0
        %1128 = vmatpush1.bf16.msra.mxu0 %v990
        %1129 = vmatprep.subr.bf16.mxu0 0
        %1130 = vmatpush1.bf16.msra.mxu0 %v989
        %1131 = vmatprep.subr.bf16.mxu0 0
        %1132 = vmatpush1.bf16.msra.mxu0 %v988
        %1133 = vmatprep.subr.bf16.mxu0 0
        %1134 = vmatpush1.bf16.msra.mxu0 %v987
        %1135 = vmatprep.subr.bf16.mxu0 0
        %1136 = vmatpush1.bf16.msra.mxu0 %v986
        %1137 = vmatprep.subr.bf16.mxu0 0
        %1138 = vmatpush1.bf16.msra.mxu0 %v985
        %1139 = vmatprep.subr.bf16.mxu0 0
        %1140 = vmatpush1.bf16.msra.mxu0 %v984
        %1141 = vmatprep.subr.bf16.mxu0 0
        %1142 = vmatpush1.bf16.msra.mxu0 %v983
        %1143 = vmatprep.subr.bf16.mxu0 0
        %1144 = vmatpush2.bf16.msra.mxu0 %v998
        %1145 = vmatprep.subr.bf16.mxu0 0
        %1146 = vmatpush2.bf16.msra.mxu0 %v997
        %1147 = vmatprep.subr.bf16.mxu0 0
        %1148 = vmatpush2.bf16.msra.mxu0 %v996
        %1149 = vmatprep.subr.bf16.mxu0 0
        %1150 = vmatpush2.bf16.msra.mxu0 %v995
        %1151 = vmatprep.subr.bf16.mxu0 0
        %1152 = vmatpush2.bf16.msra.mxu0 %v994
        %1153 = vmatprep.subr.bf16.mxu0 0
        %1154 = vmatpush2.bf16.msra.mxu0 %v993
        %1155 = vmatprep.subr.bf16.mxu0 0
        %1156 = vmatpush2.bf16.msra.mxu0 %v992
        %1157 = vmatprep.subr.bf16.mxu0 0
        %1158 = vmatpush2.bf16.msra.mxu0 %v991
        %1159 = vmatprep.mubr.bf16.mxu0 %v366
        %1160 = vmatmul.mubr.bf16.gmra.mxu0 %v314
        %v1161 = vpop.f32.mrf.mxu0
        %v1162 = vadd.f32 %v693, %v1161
        %v1163 = vpop.f32.mrf.mxu0
        %v1164 = vpop.f32.mrf.mxu0
        %v1165 = vadd.f32 %v693, %v1164
        %v1166 = vpop.f32.mrf.mxu0
        %1167 = vmatprep.mubr.bf16.mxu0 %v378
        %1168 = vmatmul.mubr.bf16.gmra.mxu0 %v315
        %v1169 = vpop.f32.mrf.mxu0
        %v1170 = vadd.f32 %v693, %v1169
        %v1171 = vpop.f32.mrf.mxu0
        %v1172 = vpop.f32.mrf.mxu0
        %v1173 = vadd.f32 %v693, %v1172
        %v1174 = vpop.f32.mrf.mxu0
        %1175 = vmatprep.mubr.bf16.mxu0 %v390
        %1176 = vmatmul.mubr.bf16.gmra.mxu0 %v316
        %v1177 = vpop.f32.mrf.mxu0
        %v1178 = vadd.f32 %v693, %v1177
        %v1179 = vpop.f32.mrf.mxu0
        %v1180 = vpop.f32.mrf.mxu0
        %v1181 = vadd.f32 %v693, %v1180
        %v1182 = vpop.f32.mrf.mxu0
        %1183 = vmatprep.mubr.bf16.mxu0 %v402
        %1184 = vmatmul.mubr.bf16.gmra.mxu0 %v317
        %v1185 = vpop.f32.mrf.mxu0
        %v1186 = vadd.f32 %v693, %v1185
        %v1187 = vpop.f32.mrf.mxu0
        %v1188 = vpop.f32.mrf.mxu0
        %v1189 = vadd.f32 %v693, %v1188
        %v1190 = vpop.f32.mrf.mxu0
        %1191 = vmatprep.mubr.bf16.mxu0 %v414
        %1192 = vmatmul.mubr.bf16.gmra.mxu0 %v318
        %v1193 = vpop.f32.mrf.mxu0
        %v1194 = vadd.f32 %v693, %v1193
        %v1195 = vpop.f32.mrf.mxu0
        %v1196 = vpop.f32.mrf.mxu0
        %v1197 = vadd.f32 %v693, %v1196
        %v1198 = vpop.f32.mrf.mxu0
        %1199 = vmatprep.mubr.bf16.mxu0 %v426
        %1200 = vmatmul.mubr.bf16.gmra.mxu0 %v319
        %v1201 = vpop.f32.mrf.mxu0
        %v1202 = vadd.f32 %v693, %v1201
        %v1203 = vpop.f32.mrf.mxu0
        %v1204 = vpop.f32.mrf.mxu0
        %v1205 = vadd.f32 %v693, %v1204
        %v1206 = vpop.f32.mrf.mxu0
        %1207 = vmatprep.mubr.bf16.mxu0 %v438
        %1208 = vmatmul.mubr.bf16.gmra.mxu0 %v320
        %v1209 = vpop.f32.mrf.mxu0
        %v1210 = vadd.f32 %v693, %v1209
        %v1211 = vpop.f32.mrf.mxu0
        %v1212 = vpop.f32.mrf.mxu0
        %v1213 = vadd.f32 %v693, %v1212
        %v1214 = vpop.f32.mrf.mxu0
        %1215 = vmatprep.mubr.bf16.mxu0 %v450
        %1216 = vmatmul.mubr.bf16.gmra.mxu0 %v321
        %v1217 = vpop.f32.mrf.mxu0
        %v1218 = vadd.f32 %v693, %v1217
        %v1219 = vpop.f32.mrf.mxu0
        %v1220 = vpop.f32.mrf.mxu0
        %v1221 = vadd.f32 %v693, %v1220
        %v1222 = vpop.f32.mrf.mxu0
        %1223 = vdwg.mxu0
        %1224 = vmatprep.subr.bf16.mxu0 0
        %1225 = vmatpush1.bf16.msra.mxu0 %v1006
        %1226 = vmatprep.subr.bf16.mxu0 0
        %1227 = vmatpush1.bf16.msra.mxu0 %v1005
        %1228 = vmatprep.subr.bf16.mxu0 0
        %1229 = vmatpush1.bf16.msra.mxu0 %v1004
        %1230 = vmatprep.subr.bf16.mxu0 0
        %1231 = vmatpush1.bf16.msra.mxu0 %v1003
        %1232 = vmatprep.subr.bf16.mxu0 0
        %1233 = vmatpush1.bf16.msra.mxu0 %v1002
        %1234 = vmatprep.subr.bf16.mxu0 0
        %1235 = vmatpush1.bf16.msra.mxu0 %v1001
        %1236 = vmatprep.subr.bf16.mxu0 0
        %1237 = vmatpush1.bf16.msra.mxu0 %v1000
        %1238 = vmatprep.subr.bf16.mxu0 0
        %1239 = vmatpush1.bf16.msra.mxu0 %v999
        %1240 = vmatprep.subr.bf16.mxu0 0
        %1241 = vmatpush2.bf16.msra.mxu0 %v1014
        %1242 = vmatprep.subr.bf16.mxu0 0
        %1243 = vmatpush2.bf16.msra.mxu0 %v1013
        %1244 = vmatprep.subr.bf16.mxu0 0
        %1245 = vmatpush2.bf16.msra.mxu0 %v1012
        %1246 = vmatprep.subr.bf16.mxu0 0
        %1247 = vmatpush2.bf16.msra.mxu0 %v1011
        %1248 = vmatprep.subr.bf16.mxu0 0
        %1249 = vmatpush2.bf16.msra.mxu0 %v1010
        %1250 = vmatprep.subr.bf16.mxu0 0
        %1251 = vmatpush2.bf16.msra.mxu0 %v1009
        %1252 = vmatprep.subr.bf16.mxu0 0
        %1253 = vmatpush2.bf16.msra.mxu0 %v1008
        %1254 = vmatprep.subr.bf16.mxu0 0
        %1255 = vmatpush2.bf16.msra.mxu0 %v1007
        %1256 = vmatprep.mubr.bf16.mxu0 %v315
        %1257 = vmatmul.mubr.bf16.gmra.mxu0 %v462
        %v1258 = vpop.f32.mrf.mxu0
        %v1259 = vadd.f32 %v1162, %v1258
        %v1260 = vpop.f32.mrf.mxu0
        %v1261 = vpop.f32.mrf.mxu0
        %v1262 = vadd.f32 %v1165, %v1261
        %v1263 = vpop.f32.mrf.mxu0
        %1264 = vmatprep.mubr.bf16.mxu0 %v316
        %1265 = vmatmul.mubr.bf16.gmra.mxu0 %v465
        %v1266 = vpop.f32.mrf.mxu0
        %v1267 = vadd.f32 %v1170, %v1266
        %v1268 = vpop.f32.mrf.mxu0
        %v1269 = vpop.f32.mrf.mxu0
        %v1270 = vadd.f32 %v1173, %v1269
        %v1271 = vpop.f32.mrf.mxu0
        %1272 = vmatprep.mubr.bf16.mxu0 %v317
        %1273 = vmatmul.mubr.bf16.gmra.mxu0 %v468
        %v1274 = vpop.f32.mrf.mxu0
        %v1275 = vadd.f32 %v1178, %v1274
        %v1276 = vpop.f32.mrf.mxu0
        %v1277 = vpop.f32.mrf.mxu0
        %v1278 = vadd.f32 %v1181, %v1277
        %v1279 = vpop.f32.mrf.mxu0
        %1280 = vmatprep.mubr.bf16.mxu0 %v318
        %1281 = vmatmul.mubr.bf16.gmra.mxu0 %v471
        %v1282 = vpop.f32.mrf.mxu0
        %v1283 = vadd.f32 %v1186, %v1282
        %v1284 = vpop.f32.mrf.mxu0
        %v1285 = vpop.f32.mrf.mxu0
        %v1286 = vadd.f32 %v1189, %v1285
        %v1287 = vpop.f32.mrf.mxu0
        %1288 = vmatprep.mubr.bf16.mxu0 %v319
        %1289 = vmatmul.mubr.bf16.gmra.mxu0 %v474
        %v1290 = vpop.f32.mrf.mxu0
        %v1291 = vadd.f32 %v1194, %v1290
        %v1292 = vpop.f32.mrf.mxu0
        %v1293 = vpop.f32.mrf.mxu0
        %v1294 = vadd.f32 %v1197, %v1293
        %v1295 = vpop.f32.mrf.mxu0
        %1296 = vmatprep.mubr.bf16.mxu0 %v320
        %1297 = vmatmul.mubr.bf16.gmra.mxu0 %v477
        %v1298 = vpop.f32.mrf.mxu0
        %v1299 = vadd.f32 %v1202, %v1298
        %v1300 = vpop.f32.mrf.mxu0
        %v1301 = vpop.f32.mrf.mxu0
        %v1302 = vadd.f32 %v1205, %v1301
        %v1303 = vpop.f32.mrf.mxu0
        %1304 = vmatprep.mubr.bf16.mxu0 %v321
        %1305 = vmatmul.mubr.bf16.gmra.mxu0 %v480
        %v1306 = vpop.f32.mrf.mxu0
        %v1307 = vadd.f32 %v1210, %v1306
        %v1308 = vpop.f32.mrf.mxu0
        %v1309 = vpop.f32.mrf.mxu0
        %v1310 = vadd.f32 %v1213, %v1309
        %v1311 = vpop.f32.mrf.mxu0
        %1312 = vmatprep.mubr.bf16.mxu0 %v496
        %1313 = vmatmul.mubr.bf16.gmra.mxu0 %v483
        %v1314 = vpop.f32.mrf.mxu0
        %v1315 = vadd.f32 %v1218, %v1314
        %v1316 = vpop.f32.mrf.mxu0
        %v1317 = vpop.f32.mrf.mxu0
        %v1318 = vadd.f32 %v1221, %v1317
        %v1319 = vpop.f32.mrf.mxu0
        %1320 = vdwg.mxu0
        %1321 = vmatprep.subr.bf16.mxu0 0
        %1322 = vmatpush1.bf16.msra.mxu0 %v1022
        %1323 = vmatprep.subr.bf16.mxu0 0
        %1324 = vmatpush1.bf16.msra.mxu0 %v1021
        %1325 = vmatprep.subr.bf16.mxu0 0
        %1326 = vmatpush1.bf16.msra.mxu0 %v1020
        %1327 = vmatprep.subr.bf16.mxu0 0
        %1328 = vmatpush1.bf16.msra.mxu0 %v1019
        %1329 = vmatprep.subr.bf16.mxu0 0
        %1330 = vmatpush1.bf16.msra.mxu0 %v1018
        %1331 = vmatprep.subr.bf16.mxu0 0
        %1332 = vmatpush1.bf16.msra.mxu0 %v1017
        %1333 = vmatprep.subr.bf16.mxu0 0
        %1334 = vmatpush1.bf16.msra.mxu0 %v1016
        %1335 = vmatprep.subr.bf16.mxu0 0
        %1336 = vmatpush1.bf16.msra.mxu0 %v1015
        %1337 = vmatprep.subr.bf16.mxu0 0
        %1338 = vmatpush2.bf16.msra.mxu0 %v1030
        %1339 = vmatprep.subr.bf16.mxu0 0
        %1340 = vmatpush2.bf16.msra.mxu0 %v1029
        %1341 = vmatprep.subr.bf16.mxu0 0
        %1342 = vmatpush2.bf16.msra.mxu0 %v1028
        %1343 = vmatprep.subr.bf16.mxu0 0
        %1344 = vmatpush2.bf16.msra.mxu0 %v1027
        %1345 = vmatprep.subr.bf16.mxu0 0
        %1346 = vmatpush2.bf16.msra.mxu0 %v1026
        %1347 = vmatprep.subr.bf16.mxu0 0
        %1348 = vmatpush2.bf16.msra.mxu0 %v1025
        %1349 = vmatprep.subr.bf16.mxu0 0
        %1350 = vmatpush2.bf16.msra.mxu0 %v1024
        %1351 = vmatprep.subr.bf16.mxu0 0
        %1352 = vmatpush2.bf16.msra.mxu0 %v1023
        %1353 = vmatprep.mubr.bf16.mxu0 %v465
        %1354 = vmatmul.mubr.bf16.gmra.mxu0 %v378
        %v1355 = vpop.f32.mrf.mxu0
        %v1356 = vadd.f32 %v1259, %v1355
        %v1357 = vpop.f32.mrf.mxu0
        %v1358 = vpop.f32.mrf.mxu0
        %v1359 = vadd.f32 %v1262, %v1358
        %v1360 = vpop.f32.mrf.mxu0
        %1361 = vmatprep.mubr.bf16.mxu0 %v468
        %1362 = vmatmul.mubr.bf16.gmra.mxu0 %v390
        %v1363 = vpop.f32.mrf.mxu0
        %v1364 = vadd.f32 %v1267, %v1363
        %v1365 = vpop.f32.mrf.mxu0
        %v1366 = vpop.f32.mrf.mxu0
        %v1367 = vadd.f32 %v1270, %v1366
        %v1368 = vpop.f32.mrf.mxu0
        %1369 = vmatprep.mubr.bf16.mxu0 %v471
        %1370 = vmatmul.mubr.bf16.gmra.mxu0 %v402
        %v1371 = vpop.f32.mrf.mxu0
        %v1372 = vadd.f32 %v1275, %v1371
        %v1373 = vpop.f32.mrf.mxu0
        %v1374 = vpop.f32.mrf.mxu0
        %v1375 = vadd.f32 %v1278, %v1374
        %v1376 = vpop.f32.mrf.mxu0
        %1377 = vmatprep.mubr.bf16.mxu0 %v474
        %1378 = vmatmul.mubr.bf16.gmra.mxu0 %v414
        %v1379 = vpop.f32.mrf.mxu0
        %v1380 = vadd.f32 %v1283, %v1379
        %v1381 = vpop.f32.mrf.mxu0
        %v1382 = vpop.f32.mrf.mxu0
        %v1383 = vadd.f32 %v1286, %v1382
        %v1384 = vpop.f32.mrf.mxu0
        %1385 = vmatprep.mubr.bf16.mxu0 %v477
        %1386 = vmatmul.mubr.bf16.gmra.mxu0 %v426
        %v1387 = vpop.f32.mrf.mxu0
        %v1388 = vadd.f32 %v1291, %v1387
        %v1389 = vpop.f32.mrf.mxu0
        %v1390 = vpop.f32.mrf.mxu0
        %v1391 = vadd.f32 %v1294, %v1390
        %v1392 = vpop.f32.mrf.mxu0
        %1393 = vmatprep.mubr.bf16.mxu0 %v480
        %1394 = vmatmul.mubr.bf16.gmra.mxu0 %v438
        %v1395 = vpop.f32.mrf.mxu0
        %v1396 = vadd.f32 %v1299, %v1395
        %v1397 = vpop.f32.mrf.mxu0
        %v1398 = vpop.f32.mrf.mxu0
        %v1399 = vadd.f32 %v1302, %v1398
        %v1400 = vpop.f32.mrf.mxu0
        %1401 = vmatprep.mubr.bf16.mxu0 %v483
        %1402 = vmatmul.mubr.bf16.gmra.mxu0 %v450
        %v1403 = vpop.f32.mrf.mxu0
        %v1404 = vadd.f32 %v1307, %v1403
        %v1405 = vpop.f32.mrf.mxu0
        %v1406 = vpop.f32.mrf.mxu0
        %v1407 = vadd.f32 %v1310, %v1406
        %v1408 = vpop.f32.mrf.mxu0
        %1409 = vmatprep.mubr.bf16.mxu0 %v516
        %1410 = vmatmul.mubr.bf16.gmra.mxu0 %v512
        %v1411 = vpop.f32.mrf.mxu0
        %v1412 = vadd.f32 %v1315, %v1411
        %v1413 = vpop.f32.mrf.mxu0
        %v1414 = vpop.f32.mrf.mxu0
        %v1415 = vadd.f32 %v1318, %v1414
        %v1416 = vpop.f32.mrf.mxu0
        %1417 = vdwg.mxu0
        %1418 = vmatprep.subr.bf16.mxu0 0
        %1419 = vmatpush1.bf16.msra.mxu0 %v1038
        %1420 = vmatprep.subr.bf16.mxu0 0
        %1421 = vmatpush1.bf16.msra.mxu0 %v1037
        %1422 = vmatprep.subr.bf16.mxu0 0
        %1423 = vmatpush1.bf16.msra.mxu0 %v1036
        %1424 = vmatprep.subr.bf16.mxu0 0
        %1425 = vmatpush1.bf16.msra.mxu0 %v1035
        %1426 = vmatprep.subr.bf16.mxu0 0
        %1427 = vmatpush1.bf16.msra.mxu0 %v1034
        %1428 = vmatprep.subr.bf16.mxu0 0
        %1429 = vmatpush1.bf16.msra.mxu0 %v1033
        %1430 = vmatprep.subr.bf16.mxu0 0
        %1431 = vmatpush1.bf16.msra.mxu0 %v1032
        %1432 = vmatprep.subr.bf16.mxu0 0
        %1433 = vmatpush1.bf16.msra.mxu0 %v1031
        %1434 = vmatprep.subr.bf16.mxu0 0
        %1435 = vmatpush2.bf16.msra.mxu0 %v1046
        %1436 = vmatprep.subr.bf16.mxu0 0
        %1437 = vmatpush2.bf16.msra.mxu0 %v1045
        %1438 = vmatprep.subr.bf16.mxu0 0
        %1439 = vmatpush2.bf16.msra.mxu0 %v1044
        %1440 = vmatprep.subr.bf16.mxu0 0
        %1441 = vmatpush2.bf16.msra.mxu0 %v1043
        %1442 = vmatprep.subr.bf16.mxu0 0
        %1443 = vmatpush2.bf16.msra.mxu0 %v1042
        %1444 = vmatprep.subr.bf16.mxu0 0
        %1445 = vmatpush2.bf16.msra.mxu0 %v1041
        %1446 = vmatprep.subr.bf16.mxu0 0
        %1447 = vmatpush2.bf16.msra.mxu0 %v1040
        %1448 = vmatprep.subr.bf16.mxu0 0
        %1449 = vmatpush2.bf16.msra.mxu0 %v1039
        %1450 = vmatprep.mubr.bf16.mxu0 %v390
        %1451 = vmatmul.mubr.bf16.gmra.mxu0 %v316
        %v1452 = vpop.f32.mrf.mxu0
        %v1453 = vadd.f32 %v1356, %v1452
        %v1454 = vpop.f32.mrf.mxu0
        %v1455 = vpop.f32.mrf.mxu0
        %v1456 = vadd.f32 %v1359, %v1455
        %v1457 = vpop.f32.mrf.mxu0
        %1458 = vmatprep.mubr.bf16.mxu0 %v402
        %1459 = vmatmul.mubr.bf16.gmra.mxu0 %v317
        %v1460 = vpop.f32.mrf.mxu0
        %v1461 = vadd.f32 %v1364, %v1460
        %v1462 = vpop.f32.mrf.mxu0
        %v1463 = vpop.f32.mrf.mxu0
        %v1464 = vadd.f32 %v1367, %v1463
        %v1465 = vpop.f32.mrf.mxu0
        %1466 = vmatprep.mubr.bf16.mxu0 %v414
        %1467 = vmatmul.mubr.bf16.gmra.mxu0 %v318
        %v1468 = vpop.f32.mrf.mxu0
        %v1469 = vadd.f32 %v1372, %v1468
        %v1470 = vpop.f32.mrf.mxu0
        %v1471 = vpop.f32.mrf.mxu0
        %v1472 = vadd.f32 %v1375, %v1471
        %v1473 = vpop.f32.mrf.mxu0
        %1474 = vmatprep.mubr.bf16.mxu0 %v426
        %1475 = vmatmul.mubr.bf16.gmra.mxu0 %v319
        %v1476 = vpop.f32.mrf.mxu0
        %v1477 = vadd.f32 %v1380, %v1476
        %v1478 = vpop.f32.mrf.mxu0
        %v1479 = vpop.f32.mrf.mxu0
        %v1480 = vadd.f32 %v1383, %v1479
        %v1481 = vpop.f32.mrf.mxu0
        %1482 = vmatprep.mubr.bf16.mxu0 %v438
        %1483 = vmatmul.mubr.bf16.gmra.mxu0 %v320
        %v1484 = vpop.f32.mrf.mxu0
        %v1485 = vadd.f32 %v1388, %v1484
        %v1486 = vpop.f32.mrf.mxu0
        %v1487 = vpop.f32.mrf.mxu0
        %v1488 = vadd.f32 %v1391, %v1487
        %v1489 = vpop.f32.mrf.mxu0
        %1490 = vmatprep.mubr.bf16.mxu0 %v450
        %1491 = vmatmul.mubr.bf16.gmra.mxu0 %v321
        %v1492 = vpop.f32.mrf.mxu0
        %v1493 = vadd.f32 %v1396, %v1492
        %v1494 = vpop.f32.mrf.mxu0
        %v1495 = vpop.f32.mrf.mxu0
        %v1496 = vadd.f32 %v1399, %v1495
        %v1497 = vpop.f32.mrf.mxu0
        %1498 = vmatprep.mubr.bf16.mxu0 %v512
        %1499 = vmatmul.mubr.bf16.gmra.mxu0 %v496
        %v1500 = vpop.f32.mrf.mxu0
        %v1501 = vadd.f32 %v1404, %v1500
        %v1502 = vpop.f32.mrf.mxu0
        %v1503 = vpop.f32.mrf.mxu0
        %v1504 = vadd.f32 %v1407, %v1503
        %v1505 = vpop.f32.mrf.mxu0
        %1506 = vmatprep.mubr.bf16.mxu0 %v538
        %1507 = vmatmul.mubr.bf16.gmra.mxu0 %v522
        %v1508 = vpop.f32.mrf.mxu0
        %v1509 = vadd.f32 %v1412, %v1508
        %v1510 = vpop.f32.mrf.mxu0
        %v1511 = vpop.f32.mrf.mxu0
        %v1512 = vadd.f32 %v1415, %v1511
        %v1513 = vpop.f32.mrf.mxu0
        %1514 = vdwg.mxu0
        %1515 = vmatprep.subr.bf16.mxu0 0
        %1516 = vmatpush1.bf16.msra.mxu0 %v1054
        %1517 = vmatprep.subr.bf16.mxu0 0
        %1518 = vmatpush1.bf16.msra.mxu0 %v1053
        %1519 = vmatprep.subr.bf16.mxu0 0
        %1520 = vmatpush1.bf16.msra.mxu0 %v1052
        %1521 = vmatprep.subr.bf16.mxu0 0
        %1522 = vmatpush1.bf16.msra.mxu0 %v1051
        %1523 = vmatprep.subr.bf16.mxu0 0
        %1524 = vmatpush1.bf16.msra.mxu0 %v1050
        %1525 = vmatprep.subr.bf16.mxu0 0
        %1526 = vmatpush1.bf16.msra.mxu0 %v1049
        %1527 = vmatprep.subr.bf16.mxu0 0
        %1528 = vmatpush1.bf16.msra.mxu0 %v1048
        %1529 = vmatprep.subr.bf16.mxu0 0
        %1530 = vmatpush1.bf16.msra.mxu0 %v1047
        %1531 = vmatprep.subr.bf16.mxu0 0
        %1532 = vmatpush2.bf16.msra.mxu0 0
        %1533 = vmatprep.subr.bf16.mxu0 0
        %1534 = vmatpush2.bf16.msra.mxu0 0
        %1535 = vmatprep.subr.bf16.mxu0 0
        %1536 = vmatpush2.bf16.msra.mxu0 0
        %1537 = vmatprep.subr.bf16.mxu0 0
        %1538 = vmatpush2.bf16.msra.mxu0 0
        %1539 = vmatprep.subr.bf16.mxu0 0
        %1540 = vmatpush2.bf16.msra.mxu0 0
        %1541 = vmatprep.subr.bf16.mxu0 0
        %1542 = vmatpush2.bf16.msra.mxu0 0
        %1543 = vmatprep.subr.bf16.mxu0 0
        %1544 = vmatpush2.bf16.msra.mxu0 0
        %1545 = vmatprep.subr.bf16.mxu0 0
        %1546 = vmatpush2.bf16.msra.mxu0 0
        %1547 = vmatprep.mubr.bf16.mxu0 0
        %1548 = vmatmul.mubr.bf16.gmra.mxu0 %v468
        %v1549 = vpop.f32.mrf.mxu0
        %v1550 = vadd.f32 %v1453, %v1549
        %v1551 = vpop.f32.mrf.mxu0
        %v1552 = vpop.f32.mrf.mxu0
        %v1553 = vadd.f32 %v1456, %v1552
        %v1554 = vpop.f32.mrf.mxu0
        %1555 = vmatprep.mubr.bf16.mxu0 0
        %1556 = vmatmul.mubr.bf16.gmra.mxu0 %v471
        %v1557 = vpop.f32.mrf.mxu0
        %v1558 = vadd.f32 %v1461, %v1557
        %v1559 = vpop.f32.mrf.mxu0
        %v1560 = vpop.f32.mrf.mxu0
        %v1561 = vadd.f32 %v1464, %v1560
        %v1562 = vpop.f32.mrf.mxu0
        %1563 = vmatprep.mubr.bf16.mxu0 0
        %1564 = vmatmul.mubr.bf16.gmra.mxu0 %v474
        %v1565 = vpop.f32.mrf.mxu0
        %v1566 = vadd.f32 %v1469, %v1565
        %v1567 = vpop.f32.mrf.mxu0
        %v1568 = vpop.f32.mrf.mxu0
        %v1569 = vadd.f32 %v1472, %v1568
        %v1570 = vpop.f32.mrf.mxu0
        %1571 = vmatprep.mubr.bf16.mxu0 0
        %1572 = vmatmul.mubr.bf16.gmra.mxu0 %v477
        %v1573 = vpop.f32.mrf.mxu0
        %v1574 = vadd.f32 %v1477, %v1573
        %v1575 = vpop.f32.mrf.mxu0
        %v1576 = vpop.f32.mrf.mxu0
        %v1577 = vadd.f32 %v1480, %v1576
        %v1578 = vpop.f32.mrf.mxu0
        %1579 = vmatprep.mubr.bf16.mxu0 0
        %1580 = vmatmul.mubr.bf16.gmra.mxu0 %v480
        %v1581 = vpop.f32.mrf.mxu0
        %v1582 = vadd.f32 %v1485, %v1581
        %v1583 = vpop.f32.mrf.mxu0
        %v1584 = vpop.f32.mrf.mxu0
        %v1585 = vadd.f32 %v1488, %v1584
        %v1586 = vpop.f32.mrf.mxu0
        %1587 = vmatprep.mubr.bf16.mxu0 0
        %1588 = vmatmul.mubr.bf16.gmra.mxu0 %v483
        %v1589 = vpop.f32.mrf.mxu0
        %v1590 = vadd.f32 %v1493, %v1589
        %v1591 = vpop.f32.mrf.mxu0
        %v1592 = vpop.f32.mrf.mxu0
        %v1593 = vadd.f32 %v1496, %v1592
        %v1594 = vpop.f32.mrf.mxu0
        %1595 = vmatprep.mubr.bf16.mxu0 0
        %1596 = vmatmul.mubr.bf16.gmra.mxu0 %v516
        %v1597 = vpop.f32.mrf.mxu0
        %v1598 = vadd.f32 %v1501, %v1597
        %v1599 = vpop.f32.mrf.mxu0
        %v1600 = vpop.f32.mrf.mxu0
        %v1601 = vadd.f32 %v1504, %v1600
        %v1602 = vpop.f32.mrf.mxu0
        %1603 = vmatprep.mubr.bf16.mxu0 0
        %1604 = vmatmul.mubr.bf16.gmra.mxu0 %v542
        %v1605 = vpop.f32.mrf.mxu0
        %v1606 = vadd.f32 %v1509, %v1605
        %v1607 = vpop.f32.mrf.mxu0
        %v1608 = vpop.f32.mrf.mxu0
        %v1609 = vadd.f32 %v1512, %v1608
        %v1610 = vpop.f32.mrf.mxu0
        %1611 = vdwg.mxu0
        %v1612 = vmax.f32 %v1550, 0.0
        %v1613 = vmax.f32 %v1553, 0.0
        %v1614 = vmax.f32 %v1558, 0.0
        %v1615 = vmax.f32 %v1561, 0.0
        %v1616 = vmax.f32 %v1566, 0.0
        %v1617 = vmax.f32 %v1569, 0.0
        %v1618 = vmax.f32 %v1574, 0.0
        %v1619 = vmax.f32 %v1577, 0.0
        %v1620 = vmax.f32 %v1582, 0.0
        %v1621 = vmax.f32 %v1585, 0.0
        %v1622 = vmax.f32 %v1590, 0.0
        %v1623 = vmax.f32 %v1593, 0.0
        %v1624 = vmax.f32 %v1598, 0.0
        %v1625 = vmax.f32 %v1601, 0.0
        %v1626 = vmax.f32 %v1606, 0.0
        %v1627 = vmax.f32 %v1609, 0.0
        %v1628 = vpack.c.bf16 %v1613, %v1612
        %v1629 = vpack.c.bf16 %v1615, %v1614
        %v1630 = vpack.c.bf16 %v1617, %v1616
        %v1631 = vpack.c.bf16 %v1619, %v1618
        %v1632 = vpack.c.bf16 %v1621, %v1620
        %v1633 = vpack.c.bf16 %v1623, %v1622
        %v1634 = vpack.c.bf16 %v1625, %v1624
        %v1635 = vpack.c.bf16 %v1627, %v1626
        %v1636 = vld [vmem:[%s2] sm:$0xf]
        %v1637 = vld [vmem:[%s2 + $0x4] sm:$0xf]
        %v1638 = vld [vmem:[%s2 + $0x8] sm:$0xf]
        %v1639 = vld [vmem:[%s2 + $0xc] sm:$0xf]
        %v1640 = vld [vmem:[%s2 + $0x10] sm:$0xf]
        %v1641 = vld [vmem:[%s2 + $0x14] sm:$0xf]
        %v1642 = vld [vmem:[%s2 + $0x18] sm:$0xf]
        %v1643 = vld [vmem:[%s2 + $0x1c] sm:$0xf]
        %v1644 = vld [vmem:[%s2 + $0x20] sm:$0xf]
        %v1645 = vld [vmem:[%s2 + $0x24] sm:$0xf]
        %v1646 = vld [vmem:[%s2 + $0x28] sm:$0xf]
        %v1647 = vld [vmem:[%s2 + $0x2c] sm:$0xf]
        %v1648 = vld [vmem:[%s2 + $0x30] sm:$0xf]
        %v1649 = vld [vmem:[%s2 + $0x34] sm:$0xf]
        %v1650 = vld [vmem:[%s2 + $0x38] sm:$0xf]
        %v1651 = vld [vmem:[%s2 + $0x3c] sm:$0xf]
        %v1652 = vld [vmem:[%s4] sm:$0x1]
        %v1654 = vlaneseq
        %v1655 = vshrl.u32 %v1654, 7
        %v1656 = vsub.s32 0, %v1655
        %v1657 = vrot.slane %v1652, %v1656
        %v1675 = vunpack.c.l.b16 %v1636
        %v1676 = vunpack.c.l.b16 %v1637
        %v1677 = vunpack.c.l.b16 %v1638
        %v1678 = vunpack.c.l.b16 %v1639
        %v1679 = vunpack.c.l.b16 %v1640
        %v1680 = vunpack.c.l.b16 %v1641
        %v1681 = vunpack.c.l.b16 %v1642
        %v1682 = vunpack.c.l.b16 %v1643
        %v1683 = vunpack.c.l.b16 %v1644
        %v1684 = vunpack.c.l.b16 %v1645
        %v1685 = vunpack.c.l.b16 %v1646
        %v1686 = vunpack.c.l.b16 %v1647
        %v1687 = vunpack.c.l.b16 %v1648
        %v1688 = vunpack.c.l.b16 %v1649
        %v1689 = vunpack.c.l.b16 %v1650
        %v1690 = vunpack.c.l.b16 %v1651
        %v1691 = vpack.c.b16 %v1676, %v1675
        %v1692 = vpack.c.b16 %v1678, %v1677
        %v1693 = vpack.c.b16 %v1680, %v1679
        %v1694 = vpack.c.b16 %v1682, %v1681
        %v1695 = vpack.c.b16 %v1684, %v1683
        %v1696 = vpack.c.b16 %v1686, %v1685
        %v1697 = vpack.c.b16 %v1688, %v1687
        %v1698 = vpack.c.b16 %v1690, %v1689
        %1707 = vmatprep.subr.bf16.mxu0 0
        %1708 = vmatpush1.bf16.msra.mxu0 %v1698
        %1709 = vmatprep.subr.bf16.mxu0 0
        %1710 = vmatpush1.bf16.msra.mxu0 %v1697
        %1711 = vmatprep.subr.bf16.mxu0 0
        %1712 = vmatpush1.bf16.msra.mxu0 %v1696
        %1713 = vmatprep.subr.bf16.mxu0 0
        %1714 = vmatpush1.bf16.msra.mxu0 %v1695
        %1715 = vmatprep.subr.bf16.mxu0 0
        %1716 = vmatpush1.bf16.msra.mxu0 %v1694
        %1717 = vmatprep.subr.bf16.mxu0 0
        %1718 = vmatpush1.bf16.msra.mxu0 %v1693
        %1719 = vmatprep.subr.bf16.mxu0 0
        %1720 = vmatpush1.bf16.msra.mxu0 %v1692
        %1721 = vmatprep.subr.bf16.mxu0 0
        %1722 = vmatpush1.bf16.msra.mxu0 %v1691
        %1723 = vmatprep.subr.bf16.mxu0 0
        %1724 = vmatpush2.bf16.msra.mxu0 0
        %1725 = vmatprep.subr.bf16.mxu0 0
        %1726 = vmatpush2.bf16.msra.mxu0 0
        %1727 = vmatprep.subr.bf16.mxu0 0
        %1728 = vmatpush2.bf16.msra.mxu0 0
        %1729 = vmatprep.subr.bf16.mxu0 0
        %1730 = vmatpush2.bf16.msra.mxu0 0
        %1731 = vmatprep.subr.bf16.mxu0 0
        %1732 = vmatpush2.bf16.msra.mxu0 0
        %1733 = vmatprep.subr.bf16.mxu0 0
        %1734 = vmatpush2.bf16.msra.mxu0 0
        %1735 = vmatprep.subr.bf16.mxu0 0
        %1736 = vmatpush2.bf16.msra.mxu0 0
        %1737 = vmatprep.subr.bf16.mxu0 0
        %1738 = vmatpush2.bf16.msra.mxu0 0
        %1739 = vmatprep.mubr.bf16.mxu0 0
        %1740 = vmatmul.mubr.bf16.gmra.mxu0 %v1628
        %v1741 = vpop.f32.mrf.mxu0
        %v1742 = vadd.f32 %v1657, %v1741
        %v1743 = vpop.f32.mrf.mxu0
        %v1744 = vpop.f32.mrf.mxu0
        %v1745 = vadd.f32 %v1657, %v1744
        %v1746 = vpop.f32.mrf.mxu0
        %1747 = vmatprep.mubr.bf16.mxu0 0
        %1748 = vmatmul.mubr.bf16.gmra.mxu0 %v1629
        %v1749 = vpop.f32.mrf.mxu0
        %v1750 = vadd.f32 %v1657, %v1749
        %v1751 = vpop.f32.mrf.mxu0
        %v1752 = vpop.f32.mrf.mxu0
        %v1753 = vadd.f32 %v1657, %v1752
        %v1754 = vpop.f32.mrf.mxu0
        %1755 = vmatprep.mubr.bf16.mxu0 0
        %1756 = vmatmul.mubr.bf16.gmra.mxu0 %v1630
        %v1757 = vpop.f32.mrf.mxu0
        %v1758 = vadd.f32 %v1657, %v1757
        %v1759 = vpop.f32.mrf.mxu0
        %v1760 = vpop.f32.mrf.mxu0
        %v1761 = vadd.f32 %v1657, %v1760
        %v1762 = vpop.f32.mrf.mxu0
        %1763 = vmatprep.mubr.bf16.mxu0 0
        %1764 = vmatmul.mubr.bf16.gmra.mxu0 %v1631
        %v1765 = vpop.f32.mrf.mxu0
        %v1766 = vadd.f32 %v1657, %v1765
        %v1767 = vpop.f32.mrf.mxu0
        %v1768 = vpop.f32.mrf.mxu0
        %v1769 = vadd.f32 %v1657, %v1768
        %v1770 = vpop.f32.mrf.mxu0
        %1771 = vmatprep.mubr.bf16.mxu0 0
        %1772 = vmatmul.mubr.bf16.gmra.mxu0 %v1632
        %v1773 = vpop.f32.mrf.mxu0
        %v1774 = vadd.f32 %v1657, %v1773
        %v1775 = vpop.f32.mrf.mxu0
        %v1776 = vpop.f32.mrf.mxu0
        %v1777 = vadd.f32 %v1657, %v1776
        %v1778 = vpop.f32.mrf.mxu0
        %1779 = vmatprep.mubr.bf16.mxu0 0
        %1780 = vmatmul.mubr.bf16.gmra.mxu0 %v1633
        %v1781 = vpop.f32.mrf.mxu0
        %v1782 = vadd.f32 %v1657, %v1781
        %v1783 = vpop.f32.mrf.mxu0
        %v1784 = vpop.f32.mrf.mxu0
        %v1785 = vadd.f32 %v1657, %v1784
        %v1786 = vpop.f32.mrf.mxu0
        %1787 = vmatprep.mubr.bf16.mxu0 0
        %1788 = vmatmul.mubr.bf16.gmra.mxu0 %v1634
        %v1789 = vpop.f32.mrf.mxu0
        %v1790 = vadd.f32 %v1657, %v1789
        %v1791 = vpop.f32.mrf.mxu0
        %v1792 = vpop.f32.mrf.mxu0
        %v1793 = vadd.f32 %v1657, %v1792
        %v1794 = vpop.f32.mrf.mxu0
        %1795 = vmatprep.mubr.bf16.mxu0 0
        %1796 = vmatmul.mubr.bf16.gmra.mxu0 %v1635
        %v1797 = vpop.f32.mrf.mxu0
        %v1798 = vadd.f32 %v1657, %v1797
        %v1799 = vpop.f32.mrf.mxu0
        %v1800 = vpop.f32.mrf.mxu0
        %v1801 = vadd.f32 %v1657, %v1800
        %v1802 = vpop.f32.mrf.mxu0
        %1803 = vdwg.mxu0
        %1804 = vst [vmem:[%s241] sm:$0xff] %v1742
        %1805 = vst [vmem:[%s241 + $0x8] sm:$0xff] %v1745
        %1806 = vst [vmem:[%s241 + $0x10] sm:$0xff] %v1750
        %1807 = vst [vmem:[%s241 + $0x18] sm:$0xff] %v1753
        %1808 = vst [vmem:[%s241 + $0x20] sm:$0xff] %v1758
        %1809 = vst [vmem:[%s241 + $0x28] sm:$0xff] %v1761
        %1810 = vst [vmem:[%s241 + $0x30] sm:$0xff] %v1766
        %1811 = vst [vmem:[%s241 + $0x38] sm:$0xff] %v1769
        %1812 = vst [vmem:[%s241 + $0x40] sm:$0xff] %v1774
        %1813 = vst [vmem:[%s241 + $0x48] sm:$0xff] %v1777
        %1814 = vst [vmem:[%s241 + $0x50] sm:$0xff] %v1782
        %1815 = vst [vmem:[%s241 + $0x58] sm:$0xff] %v1785
        %1816 = vst [vmem:[%s241 + $0x60] sm:$0xff] %v1790
        %1817 = vst [vmem:[%s241 + $0x68] sm:$0xff] %v1793
        %1818 = vst [vmem:[%s241 + $0x70] sm:$0xff] %v1798
        %1819 = vst [vmem:[%s241 + $0x78] sm:$0xff] %v1801
        %s1820 = sand.u32 %s153, 1
        %s1821 = scalar_lea.sflag [#allocation3], %s1820
        %s1822 = sand.u32 %s153, 1
        %s1823 = smul.addr %s1822, 128
        %s1824 = scalar_lea.vmem [#allocation2], %s1823
        // Predicated region
        $region41: #{tpu_custom_call.1} parent=39 // pred_check
          %p1825 = pneg %p163
        $region42: #{tpu_custom_call.1} parent=39 // pred_check_branch
          %1827 = sbr.rel (%p1825) target = $region44
        $region43: #{tpu_custom_call.1} parent=39 // pred_region
          %s1829 = ssub.s32 2048, 2048
          %1830 = vsyncadd %s1821, %s1829
          %s1831 = smul.addr %s24, 16
          %s1832 = smul.addr %s23, 32
          %s1833 = sadd.s32 %s1831, %s1832
          %s1834 = smul.addr %s1833, 128
          %s1835 = scalar_lea.hbm %s5, %s1834
          %s1836 = sshll.u32 %s1824, 4
          %s1837 = int_to_ptr.vmem [resolvable:$true] %s1836
          %1842 = dma.vmem_to_hbm [thread:$0]  %s1837, 2048, %s1835, %s1821, 128, 128, 8
        $region44: #{tpu_custom_call.1} parent=39 // pred_fallthru
          _
      $region40: #{tpu_custom_call.1} parent=5 // pred_fallthru
        _
      %p1843 = scmp.le.s32.totalorder 2, %s14
      // Predicated region
      $region45: #{tpu_custom_call.1} parent=5 // pred_check
        %p1844 = pneg %p1843
      $region46: #{tpu_custom_call.1} parent=5 // pred_check_branch
        %1846 = sbr.rel (%p1844) target = $region48
      $region47: #{tpu_custom_call.1} parent=5 // pred_region
        %s1847 = ssub.s32 %s14, 2
        // Predicated region
        $region49: #{tpu_custom_call.1} parent=47 // pred_check
          %p1848 = pneg %p169
        $region50: #{tpu_custom_call.1} parent=47 // pred_check_branch
          %1850 = sbr.rel (%p1848) target = $region52
        $region51: #{tpu_custom_call.1} parent=47 // pred_region
          %s1851 = sand.u32 %s154, 1
          %s1852 = scalar_lea.sflag [#allocation3], %s1851
          %s1853 = sand.u32 %s154, 1
          %s1854 = smul.addr %s1853, 128
          %s1855 = scalar_lea.vmem [#allocation2], %s1854
          %1856 = dma.done %s1852, 2048
        $region52: #{tpu_custom_call.1} parent=47 // pred_fallthru
          _
      $region48: #{tpu_custom_call.1} parent=5 // pred_fallthru
        _
    $region6: #{tpu_custom_call.1} parent=1 // loop_footer
      %s18 = sadd.s32 1, %s14
    $region7: #{tpu_custom_call.1} parent=1 // loop_footer_branch
      %13 = sbr.rel target = $region3
    $region8: #{tpu_custom_call.1} parent=1 // loop_exit
      _
    %1857 = vsyncpa [#allocation3], 1
    %s1858 = scalar_lea.sflag [#allocation3], 1
    %1859 = vsyncpa %s1858, 1

</llo_original>
